<compile_context>
chip_gen: v5e
topology: v5e:2x2
jax: 0.10.0
libtpu: 0.0.40
codegen_flags: <defaults>
</compile_context>

<pallas_src>
import functools
import math

import jax
import jax.numpy as jnp
import numpy as np
from jax.experimental import pallas as pl
from jax.experimental.pallas import tpu as pltpu

_HIGHEST = jax.lax.Precision.HIGHEST   # only for the tiny (C,C)@(C,1) stat dots


def _attn_blockpp_kernel(x_ref, gavg_ref, gamma_ref, beta_ref,
                         w0t_ref, b0_ref, w1t_ref, b1_ref,
                         w2t_ref, b2_ref, w3t_ref, b3_ref,
                         o_ref, attn_ref, *, n_heads, skip_rescale, eps):
    x = x_ref[0].astype(jnp.float32)                  # (C, HW), lanes = H*W
    c, hw = x.shape
    c_head = c // n_heads

    # ---------------- GroupNorm (stats stay f32) ----------------------------
    # Reduce over the spatial (lane) axis first -> two (C,1) vectors, then
    # group-average those with a tiny (C,C)@(C,1) matmul.
    inv_hw = 1.0 / hw
    s1 = jnp.sum(x, axis=1, keepdims=True) * inv_hw          # per-channel mean
    s2 = jnp.sum(x * x, axis=1, keepdims=True) * inv_hw      # per-channel E[x^2]
    gavg = gavg_ref[...]
    mean = jnp.dot(gavg, s1, precision=_HIGHEST,
                   preferred_element_type=jnp.float32)        # (C,1) group mean
    ex2 = jnp.dot(gavg, s2, precision=_HIGHEST,
                  preferred_element_type=jnp.float32)         # (C,1) group E[x^2]
    var = jnp.maximum(ex2 - mean * mean, 0.0)
    inv = jax.lax.rsqrt(var + eps)
    h = (x - mean) * inv * gamma_ref[...] + beta_ref[...]     # f32 (C, HW)
    h_bf = h.astype(jnp.bfloat16)                             # MXU operand

    # ---------------- NIN 1x1 projections: y = W^T @ h + b ------------------
    def nin(t_bf, wt_ref, b_ref):
        y = jnp.dot(wt_ref[...], t_bf,                        # bf16 x bf16 MXU
                    preferred_element_type=jnp.float32)       # f32 accumulate
        return y + b_ref[...]

    # 1/sqrt(c_head) attention scale is already folded into W0/b0 (wrapper).
    q = nin(h_bf, w0t_ref, b0_ref)                            # (C, HW)
    k = nin(h_bf, w1t_ref, b1_ref)
    v = nin(h_bf, w2t_ref, b2_ref)

    ones8 = jnp.ones((8, hw), jnp.bfloat16)    # hoisted row-sum helper operand

    def head_attn(qh, kh, vh):
        qb = qh.astype(jnp.bfloat16)
        kb = kh.astype(jnp.bfloat16)
        vb = vh.astype(jnp.bfloat16)
        # s[i, j] = sum_c q[c, i] * k[c, j]  (contract axis 0 directly, no .T)
        s = jax.lax.dot_general(qb, kb, (((0,), (0,)), ((), ())),
                                preferred_element_type=jnp.float32)   # (HW,HW)
        s = s - jnp.max(s, axis=-1, keepdims=True)
        p = jnp.exp(s)                                        # unnormalized f32
        pb = p.astype(jnp.bfloat16)
        # out[c, i] = sum_j v[c, j] * p[i, j]   (NT matmul)
        o = jax.lax.dot_general(vb, pb, (((1,), (1,)), ((), ())),
                                preferred_element_type=jnp.float32)   # (ch,HW)
        # Row sums of p produced directly in (1, HW) lane orientation via a
        # tiny ones-matmul (avoids a sublane->lane relayout of (HW,1) sums).
        lsum = jax.lax.dot_general(ones8, pb, (((1,), (1,)), ((), ())),
                                   preferred_element_type=jnp.float32)
        inv_l = pl.reciprocal(lsum[0:1, :], approx=True)      # EUP, (1, HW)
        return o * inv_l                                      # deferred softmax norm

    if n_heads == 1:
        attn = head_attn(q, k, v)
    else:
        # Heads write into a shared (C,HW) VMEM scratch: no concatenate copy.
        for hd in range(n_heads):
            lo = hd * c_head
            attn_ref[lo:lo + c_head, :] = head_attn(
                q[lo:lo + c_head], k[lo:lo + c_head], v[lo:lo + c_head])
        attn = attn_ref[...]

    out = x + nin(attn.astype(jnp.bfloat16), w3t_ref, b3_ref)
    if skip_rescale:
        out = out * (1.0 / math.sqrt(2.0))
    o_ref[0] = out.astype(o_ref.dtype)


def attn_blockpp_forward(x, params, *, n_heads=1, skip_rescale=False, eps=1e-6):
    """x: (B, C, H, W). params: gn_gamma, gn_beta, W0..W3 (C,C), b0..b3 (C,)."""
    B, C, H, W = x.shape
    HW = H * W
    assert C % n_heads == 0
    c_head = C // n_heads
    scale = float(c_head) ** -0.5

    # group structure of nn.GroupNorm(min(C // 4, 32), C)
    groups = max(min(C // 4, 32), 1)
    assert C % groups == 0
    cg = C // groups
    gid = np.arange(C) // cg
    gavg = jnp.asarray(
        (gid[:, None] == gid[None, :]).astype(np.float32) / cg)      # (C, C) f32

    x3 = x.reshape(B, C, HW)                      # free view: NCHW stays NCHW
    col = lambda a: jnp.asarray(a, jnp.float32).reshape(C, 1)
    wt_bf = lambda a: jnp.asarray(a, jnp.float32).T.astype(jnp.bfloat16)

    # Fold the 1/sqrt(c_head) attention scale into the q projection (free).
    w0t = (jnp.asarray(params["W0"], jnp.float32) * scale).T.astype(jnp.bfloat16)
    b0 = col(params["b0"]) * scale

    # --- VMEM budget: sized from the actual per-step footprint, capped by the
    # physical capacity of this TPU generation; never clamped below the need.
    F32, BF16 = 4, 2
    itemsize = int(jnp.dtype(x.dtype).itemsize)
    per_step = (
        2 * 2 * C * HW * itemsize             # x / out blocks, double-buffered
        + C * HW * (F32 + BF16)               # h (f32) + bf16 cast
        + 3 * C * HW * (F32 + BF16)           # q, k, v (+ bf16 casts)
        + HW * HW * (2 * F32 + BF16)          # scores + probs (f32) + bf16 probs
        + C * HW * F32                        # multi-head scratch
        + 5 * C * C * BF16 + C * C * F32      # pinned bf16 weights + f32 gavg
        + 16 * C * F32 + 8 * HW * BF16
    )
    try:
        vmem_cap = int(pltpu.get_tpu_info().vmem_capacity_bytes)
    except Exception:                          # conservative fallback (v7x/TC)
        vmem_cap = 64 * 1024 * 1024
    vmem_limit = max(int(per_step * 1.25), 32 * 1024 * 1024)
    vmem_limit = int(min(vmem_limit, vmem_cap - 2 * 1024 * 1024))

    cost = pl.CostEstimate(
        flops=int(B * (8 * C * C * HW + 4 * C * HW * HW
                       + 16 * n_heads * HW * HW + 12 * C * HW)),
        transcendentals=int(B * n_heads * HW * HW),
        bytes_accessed=int(2 * B * C * HW * itemsize
                           + 5 * C * C * BF16 + C * C * F32 + 8 * C * F32),
    )

    kernel = functools.partial(_attn_blockpp_kernel, n_heads=n_heads,
                               skip_rescale=skip_rescale, eps=float(eps))

    const = lambda shape: pl.BlockSpec(shape, lambda b: (0, 0))
    in_specs = [
        pl.BlockSpec((1, C, HW), lambda b: (b, 0, 0)),   # x (per-batch block)
        const((C, C)),                                    # group-avg matrix (f32)
        const((C, 1)), const((C, 1)),                     # gamma, beta
        const((C, C)), const((C, 1)),                     # W0^T (bf16, scaled), b0
        const((C, C)), const((C, 1)),                     # W1^T, b1
        const((C, C)), const((C, 1)),                     # W2^T, b2
        const((C, C)), const((C, 1)),                     # W3^T, b3
    ]

    y3 = pl.pallas_call(
        kernel,
        out_shape=jax.ShapeDtypeStruct((B, C, HW), x.dtype),
        grid=(B,),
        in_specs=in_specs,
        out_specs=pl.BlockSpec((1, C, HW), lambda b: (b, 0, 0)),
        scratch_shapes=[pltpu.VMEM((C, HW), jnp.float32)],   # multi-head output
        compiler_params=pltpu.CompilerParams(
            dimension_semantics=("parallel",),
            vmem_limit_bytes=vmem_limit),
        cost_estimate=cost,
    )(x3, gavg,
      col(params["gn_gamma"]), col(params["gn_beta"]),
      w0t, b0,
      wt_bf(params["W1"]), col(params["b1"]),
      wt_bf(params["W2"]), col(params["b2"]),
      wt_bf(params["W3"]), col(params["b3"]))

    return y3.reshape(B, C, H, W)


# ----------------------------- reference & init ------------------------------

def default_init_uniform(key, shape, scale=0.1):
    """fan_avg / uniform variance-scaling init (matches default_init)."""
    scale = 1e-10 if scale == 0 else scale
    fan_in, fan_out = shape[0], shape[1]
    variance = scale / ((fan_in + fan_out) / 2.0)
    lim = np.sqrt(3.0 * variance)
    return jax.random.uniform(key, shape, dtype=jnp.float32,
                              minval=-lim, maxval=lim)


def attn_blockpp_reference(x, params, *, n_heads=1, skip_rescale=False, eps=1e-6):
    """Pure-JAX mirror of the PyTorch AttnBlockpp forward (f32, HIGHEST)."""
    B, C, H, W = x.shape
    groups = max(min(C // 4, 32), 1)
    xg = x.reshape(B, groups, C // groups, H, W)
    mean = jnp.mean(xg, axis=(2, 3, 4), keepdims=True)
    var = jnp.var(xg, axis=(2, 3, 4), keepdims=True)
    h = ((xg - mean) / jnp.sqrt(var + eps)).reshape(B, C, H, W)
    h = (h * params["gn_gamma"][None, :, None, None]
         + params["gn_beta"][None, :, None, None])

    def nin(t, Wm, bv):
        t = jnp.transpose(t, (0, 2, 3, 1))
        y = jnp.einsum("bhwc,cu->bhwu", t, Wm, precision=_HIGHEST) + bv
        return jnp.transpose(y, (0, 3, 1, 2))

    q = nin(h, params["W0"], params["b0"])
    k = nin(h, params["W1"], params["b1"])
    v = nin(h, params["W2"], params["b2"])

    ch = C // n_heads
    qr = q.reshape(B * n_heads, ch, H, W)
    kr = k.reshape(B * n_heads, ch, H, W)
    vr = v.reshape(B * n_heads, ch, H, W)
    w = jnp.einsum("bchw,bcij->bhwij", qr, kr, precision=_HIGHEST) * (ch ** -0.5)
    w = jax.nn.softmax(w.reshape(B * n_heads, H, W, H * W), axis=-1)
    w = w.reshape(B * n_heads, H, W, H, W)
    a = jnp.einsum("bhwij,bcij->bchw", w, vr, precision=_HIGHEST)
    a = nin(a.reshape(B, C, H, W), params["W3"], params["b3"])
    out = x + a
    if skip_rescale:
        out = out / np.sqrt(2.0)
    return out


if __name__ == "__main__":
    key = jax.random.PRNGKey(0)
    keys = jax.random.split(key, 11)

    B, C, H, W = 2, 4, 16, 16
    n_heads = 1

    x = jax.random.normal(keys[0], (B, C, H, W), dtype=jnp.float32)
    params = {
        "gn_gamma": 1.0 + 0.1 * jax.random.normal(keys[1], (C,), dtype=jnp.float32),
        "gn_beta": 0.1 * jax.random.normal(keys[2], (C,), dtype=jnp.float32),
        "W0": default_init_uniform(keys[3], (C, C), scale=0.1),
        "b0": 0.05 * jax.random.normal(keys[4], (C,), dtype=jnp.float32),
        "W1": default_init_uniform(keys[5], (C, C), scale=0.1),
        "b1": 0.05 * jax.random.normal(keys[6], (C,), dtype=jnp.float32),
        "W2": default_init_uniform(keys[7], (C, C), scale=0.1),
        "b2": 0.05 * jax.random.normal(keys[8], (C,), dtype=jnp.float32),
        # Module default for NIN_3 is init_scale=0.0 (near-zero weights); use
        # 0.1 here so the numerical check actually exercises the attention path.
        "W3": default_init_uniform(keys[9], (C, C), scale=0.1),
        "b3": 0.05 * jax.random.normal(keys[10], (C,), dtype=jnp.float32),
    }

    y = attn_blockpp_forward(x, params, n_heads=n_heads, skip_rescale=False)
    y = jax.block_until_ready(y)

    y_ref = attn_blockpp_reference(x, params, n_heads=n_heads, skip_rescale=False)
    assert y.shape == (B, C, H, W)
    # bf16 MXU operands (f32 accumulation) -> looser tolerance than the f32
    # HIGHEST-precision reference.
    np.testing.assert_allclose(np.asarray(y), np.asarray(y_ref),
                               rtol=1e-2, atol=1e-2)

    print("KERNEL_OK")
</pallas_src>

<mosaic_0001>
module attributes {stable_mosaic.version = 11 : i64} {
  func.func @_attn_blockpp_kernel(%arg0: i32, %arg1: memref<1x4x256xf32, #tpu.memory_space<vmem>>, %arg2: memref<4x4xf32, #tpu.memory_space<vmem>>, %arg3: memref<4x1xf32, #tpu.memory_space<vmem>>, %arg4: memref<4x1xf32, #tpu.memory_space<vmem>>, %arg5: memref<4x4xbf16, #tpu.memory_space<vmem>>, %arg6: memref<4x1xf32, #tpu.memory_space<vmem>>, %arg7: memref<4x4xbf16, #tpu.memory_space<vmem>>, %arg8: memref<4x1xf32, #tpu.memory_space<vmem>>, %arg9: memref<4x4xbf16, #tpu.memory_space<vmem>>, %arg10: memref<4x1xf32, #tpu.memory_space<vmem>>, %arg11: memref<4x4xbf16, #tpu.memory_space<vmem>>, %arg12: memref<4x1xf32, #tpu.memory_space<vmem>>, %arg13: memref<1x4x256xf32, #tpu.memory_space<vmem>>, %arg14: memref<4x256xf32, #tpu.memory_space<vmem>>) attributes {dimension_semantics = [#tpu.dimension_semantics<parallel>], iteration_bounds = array<i64: 2>, scalar_prefetch = 0 : i64, scratch_operands = 1 : i64, tpu.core_type = #tpu.core_type<tc>, window_params = [{transform_indices = @transform_0, window_bounds = array<i64: 1, 4, 256>}, {pipeline_mode = #tpu.pipeline_mode<synchronous>, transform_indices = @transform_1, window_bounds = array<i64: 4, 4>}, {pipeline_mode = #tpu.pipeline_mode<synchronous>, transform_indices = @transform_2, window_bounds = array<i64: 4, 1>}, {pipeline_mode = #tpu.pipeline_mode<synchronous>, transform_indices = @transform_3, window_bounds = array<i64: 4, 1>}, {pipeline_mode = #tpu.pipeline_mode<synchronous>, transform_indices = @transform_4, window_bounds = array<i64: 4, 4>}, {pipeline_mode = #tpu.pipeline_mode<synchronous>, transform_indices = @transform_5, window_bounds = array<i64: 4, 1>}, {pipeline_mode = #tpu.pipeline_mode<synchronous>, transform_indices = @transform_6, window_bounds = array<i64: 4, 4>}, {pipeline_mode = #tpu.pipeline_mode<synchronous>, transform_indices = @transform_7, window_bounds = array<i64: 4, 1>}, {pipeline_mode = #tpu.pipeline_mode<synchronous>, transform_indices = @transform_8, window_bounds = array<i64: 4, 4>}, {pipeline_mode = #tpu.pipeline_mode<synchronous>, transform_indices = @transform_9, window_bounds = array<i64: 4, 1>}, {pipeline_mode = #tpu.pipeline_mode<synchronous>, transform_indices = @transform_10, window_bounds = array<i64: 4, 4>}, {pipeline_mode = #tpu.pipeline_mode<synchronous>, transform_indices = @transform_11, window_bounds = array<i64: 4, 1>}, {transform_indices = @transform_12, window_bounds = array<i64: 1, 4, 256>}]} {
    %c0 = arith.constant 0 : index
    %c0_0 = arith.constant 0 : index
    %c0_1 = arith.constant 0 : index
    %0 = vector.load %arg1[%c0, %c0_0, %c0_1] : memref<1x4x256xf32, #tpu.memory_space<vmem>>, vector<1x4x256xf32>
    %1 = vector.shape_cast %0 : vector<1x4x256xf32> to vector<4x256xf32>
    %cst = arith.constant dense<0.000000e+00> : vector<4xf32>
    %2 = vector.multi_reduction <add>, %1, %cst [1] : vector<4x256xf32> to vector<4xf32>
    %3 = vector.shape_cast %2 : vector<4xf32> to vector<4x1xf32>
    %cst_2 = arith.constant 3.906250e-03 : f32
    %4 = vector.broadcast %cst_2 : f32 to vector<4x1xf32>
    %5 = arith.mulf %3, %4 : vector<4x1xf32>
    %6 = arith.mulf %1, %1 : vector<4x256xf32>
    %cst_3 = arith.constant dense<0.000000e+00> : vector<4xf32>
    %7 = vector.multi_reduction <add>, %6, %cst_3 [1] : vector<4x256xf32> to vector<4xf32>
    %8 = vector.shape_cast %7 : vector<4xf32> to vector<4x1xf32>
    %cst_4 = arith.constant 3.906250e-03 : f32
    %9 = vector.broadcast %cst_4 : f32 to vector<4x1xf32>
    %10 = arith.mulf %8, %9 : vector<4x1xf32>
    %c0_5 = arith.constant 0 : index
    %c0_6 = arith.constant 0 : index
    %11 = vector.load %arg2[%c0_5, %c0_6] : memref<4x4xf32, #tpu.memory_space<vmem>>, vector<4x4xf32>
    %cst_7 = arith.constant dense<0.000000e+00> : vector<4x1xf32>
    %12 = tpu.matmul %11, %5, %cst_7 {dimension_numbers = #tpu.dot_dimension_numbers<[1], [0], [0], [1], [0, 0, 1, 1], [], []>, precision = #tpu.contract_precision<fp32>} : vector<4x4xf32>, vector<4x1xf32>, vector<4x1xf32> -> vector<4x1xf32>
    %cst_8 = arith.constant dense<0.000000e+00> : vector<4x1xf32>
    %13 = tpu.matmul %11, %10, %cst_8 {dimension_numbers = #tpu.dot_dimension_numbers<[1], [0], [0], [1], [0, 0, 1, 1], [], []>, precision = #tpu.contract_precision<fp32>} : vector<4x4xf32>, vector<4x1xf32>, vector<4x1xf32> -> vector<4x1xf32>
    %14 = arith.mulf %12, %12 : vector<4x1xf32>
    %15 = arith.subf %13, %14 : vector<4x1xf32>
    %cst_9 = arith.constant 0.000000e+00 : f32
    %16 = vector.broadcast %cst_9 : f32 to vector<4x1xf32>
    %17 = arith.maximumf %15, %16 : vector<4x1xf32>
    %cst_10 = arith.constant 9.99999997E-7 : f32
    %18 = vector.broadcast %cst_10 : f32 to vector<4x1xf32>
    %19 = arith.addf %17, %18 : vector<4x1xf32>
    %20 = math.rsqrt %19 : vector<4x1xf32>
    %21 = vector.broadcast %12 : vector<4x1xf32> to vector<4x256xf32>
    %22 = arith.subf %1, %21 : vector<4x256xf32>
    %23 = vector.broadcast %20 : vector<4x1xf32> to vector<4x256xf32>
    %24 = arith.mulf %22, %23 : vector<4x256xf32>
    %c0_11 = arith.constant 0 : index
    %c0_12 = arith.constant 0 : index
    %25 = vector.load %arg3[%c0_11, %c0_12] : memref<4x1xf32, #tpu.memory_space<vmem>>, vector<4x1xf32>
    %26 = vector.broadcast %25 : vector<4x1xf32> to vector<4x256xf32>
    %27 = arith.mulf %24, %26 : vector<4x256xf32>
    %c0_13 = arith.constant 0 : index
    %c0_14 = arith.constant 0 : index
    %28 = vector.load %arg4[%c0_13, %c0_14] : memref<4x1xf32, #tpu.memory_space<vmem>>, vector<4x1xf32>
    %29 = vector.broadcast %28 : vector<4x1xf32> to vector<4x256xf32>
    %30 = arith.addf %27, %29 : vector<4x256xf32>
    %31 = arith.truncf %30 : vector<4x256xf32> to vector<4x256xbf16>
    %c0_15 = arith.constant 0 : index
    %c0_16 = arith.constant 0 : index
    %32 = vector.load %arg5[%c0_15, %c0_16] : memref<4x4xbf16, #tpu.memory_space<vmem>>, vector<4x4xbf16>
    %cst_17 = arith.constant dense<0.000000e+00> : vector<4x256xf32>
    %33 = tpu.matmul %32, %31, %cst_17 {dimension_numbers = #tpu.dot_dimension_numbers<[1], [0], [0], [1], [0, 0, 1, 1], [], []>} : vector<4x4xbf16>, vector<4x256xbf16>, vector<4x256xf32> -> vector<4x256xf32>
    %c0_18 = arith.constant 0 : index
    %c0_19 = arith.constant 0 : index
    %34 = vector.load %arg6[%c0_18, %c0_19] : memref<4x1xf32, #tpu.memory_space<vmem>>, vector<4x1xf32>
    %35 = vector.broadcast %34 : vector<4x1xf32> to vector<4x256xf32>
    %36 = arith.addf %33, %35 : vector<4x256xf32>
    %c0_20 = arith.constant 0 : index
    %c0_21 = arith.constant 0 : index
    %37 = vector.load %arg7[%c0_20, %c0_21] : memref<4x4xbf16, #tpu.memory_space<vmem>>, vector<4x4xbf16>
    %cst_22 = arith.constant dense<0.000000e+00> : vector<4x256xf32>
    %38 = tpu.matmul %37, %31, %cst_22 {dimension_numbers = #tpu.dot_dimension_numbers<[1], [0], [0], [1], [0, 0, 1, 1], [], []>} : vector<4x4xbf16>, vector<4x256xbf16>, vector<4x256xf32> -> vector<4x256xf32>
    %c0_23 = arith.constant 0 : index
    %c0_24 = arith.constant 0 : index
    %39 = vector.load %arg8[%c0_23, %c0_24] : memref<4x1xf32, #tpu.memory_space<vmem>>, vector<4x1xf32>
    %40 = vector.broadcast %39 : vector<4x1xf32> to vector<4x256xf32>
    %41 = arith.addf %38, %40 : vector<4x256xf32>
    %c0_25 = arith.constant 0 : index
    %c0_26 = arith.constant 0 : index
    %42 = vector.load %arg9[%c0_25, %c0_26] : memref<4x4xbf16, #tpu.memory_space<vmem>>, vector<4x4xbf16>
    %cst_27 = arith.constant dense<0.000000e+00> : vector<4x256xf32>
    %43 = tpu.matmul %42, %31, %cst_27 {dimension_numbers = #tpu.dot_dimension_numbers<[1], [0], [0], [1], [0, 0, 1, 1], [], []>} : vector<4x4xbf16>, vector<4x256xbf16>, vector<4x256xf32> -> vector<4x256xf32>
    %c0_28 = arith.constant 0 : index
    %c0_29 = arith.constant 0 : index
    %44 = vector.load %arg10[%c0_28, %c0_29] : memref<4x1xf32, #tpu.memory_space<vmem>>, vector<4x1xf32>
    %45 = vector.broadcast %44 : vector<4x1xf32> to vector<4x256xf32>
    %46 = arith.addf %43, %45 : vector<4x256xf32>
    %cst_30 = arith.constant 1.000000e+00 : bf16
    %47 = vector.broadcast %cst_30 : bf16 to vector<8x256xbf16>
    %48 = arith.truncf %36 : vector<4x256xf32> to vector<4x256xbf16>
    %49 = arith.truncf %41 : vector<4x256xf32> to vector<4x256xbf16>
    %50 = arith.truncf %46 : vector<4x256xf32> to vector<4x256xbf16>
    %cst_31 = arith.constant dense<0.000000e+00> : vector<256x256xf32>
    %51 = tpu.matmul %48, %49, %cst_31 {dimension_numbers = #tpu.dot_dimension_numbers<[0], [0], [1], [1], [0, 1, 1, 1], [], []>} : vector<4x256xbf16>, vector<4x256xbf16>, vector<256x256xf32> -> vector<256x256xf32>
    %cst_32 = arith.constant dense<0xFF800000> : vector<256xf32>
    %52 = vector.multi_reduction <maximumf>, %51, %cst_32 [1] : vector<256x256xf32> to vector<256xf32>
    %53 = vector.shape_cast %52 : vector<256xf32> to vector<256x1xf32>
    %54 = vector.broadcast %53 : vector<256x1xf32> to vector<256x256xf32>
    %55 = arith.subf %51, %54 : vector<256x256xf32>
    %56 = math.exp %55 : vector<256x256xf32>
    %57 = arith.truncf %56 : vector<256x256xf32> to vector<256x256xbf16>
    %cst_33 = arith.constant dense<0.000000e+00> : vector<4x256xf32>
    %58 = tpu.matmul %50, %57, %cst_33 {dimension_numbers = #tpu.dot_dimension_numbers<[1], [1], [0], [0], [0, 0, 1, 0], [], []>} : vector<4x256xbf16>, vector<256x256xbf16>, vector<4x256xf32> -> vector<4x256xf32>
    %cst_34 = arith.constant dense<0.000000e+00> : vector<8x256xf32>
    %59 = tpu.matmul %47, %57, %cst_34 {dimension_numbers = #tpu.dot_dimension_numbers<[1], [1], [0], [0], [0, 0, 1, 0], [], []>} : vector<8x256xbf16>, vector<256x256xbf16>, vector<8x256xf32> -> vector<8x256xf32>
    %60 = vector.extract_strided_slice %59 {offsets = [0, 0], sizes = [1, 256], strides = [1, 1]} : vector<8x256xf32> to vector<1x256xf32>
    %61 = tpu.reciprocal %60 {approx = true} : vector<1x256xf32> -> vector<1x256xf32>
    %62 = vector.broadcast %61 : vector<1x256xf32> to vector<4x256xf32>
    %63 = arith.mulf %58, %62 : vector<4x256xf32>
    %64 = arith.truncf %63 : vector<4x256xf32> to vector<4x256xbf16>
    %c0_35 = arith.constant 0 : index
    %c0_36 = arith.constant 0 : index
    %65 = vector.load %arg11[%c0_35, %c0_36] : memref<4x4xbf16, #tpu.memory_space<vmem>>, vector<4x4xbf16>
    %cst_37 = arith.constant dense<0.000000e+00> : vector<4x256xf32>
    %66 = tpu.matmul %65, %64, %cst_37 {dimension_numbers = #tpu.dot_dimension_numbers<[1], [0], [0], [1], [0, 0, 1, 1], [], []>} : vector<4x4xbf16>, vector<4x256xbf16>, vector<4x256xf32> -> vector<4x256xf32>
    %c0_38 = arith.constant 0 : index
    %c0_39 = arith.constant 0 : index
    %67 = vector.load %arg12[%c0_38, %c0_39] : memref<4x1xf32, #tpu.memory_space<vmem>>, vector<4x1xf32>
    %68 = vector.broadcast %67 : vector<4x1xf32> to vector<4x256xf32>
    %69 = arith.addf %66, %68 : vector<4x256xf32>
    %70 = arith.addf %1, %69 : vector<4x256xf32>
    %c0_40 = arith.constant 0 : index
    %c0_41 = arith.constant 0 : index
    %c0_42 = arith.constant 0 : index
    %71 = vector.load %arg13[%c0_40, %c0_41, %c0_42] : memref<1x4x256xf32, #tpu.memory_space<vmem>>, vector<1x4x256xf32>
    %72 = vector.shape_cast %71 : vector<1x4x256xf32> to vector<4x256xf32>
    %73 = vector.shape_cast %70 : vector<4x256xf32> to vector<1x4x256xf32>
    tpu.vector_store %arg13[%c0_40, %c0_41, %c0_42], %73 {strides = array<i32>} : memref<1x4x256xf32, #tpu.memory_space<vmem>>, vector<1x4x256xf32>,
    return
  }
  func.func @transform_0(%arg0: i32) -> (i32, i32, i32) {
    %c0_i32 = arith.constant 0 : i32
    %c0_i32_0 = arith.constant 0 : i32
    %c0_i32_1 = arith.constant 0 : i32
    return %arg0, %c0_i32, %c0_i32_0 : i32, i32, i32
  }
  func.func @transform_1(%arg0: i32) -> (i32, i32) {
    %c0_i32 = arith.constant 0 : i32
    %c0_i32_0 = arith.constant 0 : i32
    %c0_i32_1 = arith.constant 0 : i32
    return %c0_i32, %c0_i32_0 : i32, i32
  }
  func.func @transform_2(%arg0: i32) -> (i32, i32) {
    %c0_i32 = arith.constant 0 : i32
    %c0_i32_0 = arith.constant 0 : i32
    %c0_i32_1 = arith.constant 0 : i32
    return %c0_i32, %c0_i32_0 : i32, i32
  }
  func.func @transform_3(%arg0: i32) -> (i32, i32) {
    %c0_i32 = arith.constant 0 : i32
    %c0_i32_0 = arith.constant 0 : i32
    %c0_i32_1 = arith.constant 0 : i32
    return %c0_i32, %c0_i32_0 : i32, i32
  }
  func.func @transform_4(%arg0: i32) -> (i32, i32) {
    %c0_i32 = arith.constant 0 : i32
    %c0_i32_0 = arith.constant 0 : i32
    %c0_i32_1 = arith.constant 0 : i32
    return %c0_i32, %c0_i32_0 : i32, i32
  }
  func.func @transform_5(%arg0: i32) -> (i32, i32) {
    %c0_i32 = arith.constant 0 : i32
    %c0_i32_0 = arith.constant 0 : i32
    %c0_i32_1 = arith.constant 0 : i32
    return %c0_i32, %c0_i32_0 : i32, i32
  }
  func.func @transform_6(%arg0: i32) -> (i32, i32) {
    %c0_i32 = arith.constant 0 : i32
    %c0_i32_0 = arith.constant 0 : i32
    %c0_i32_1 = arith.constant 0 : i32
    return %c0_i32, %c0_i32_0 : i32, i32
  }
  func.func @transform_7(%arg0: i32) -> (i32, i32) {
    %c0_i32 = arith.constant 0 : i32
    %c0_i32_0 = arith.constant 0 : i32
    %c0_i32_1 = arith.constant 0 : i32
    return %c0_i32, %c0_i32_0 : i32, i32
  }
  func.func @transform_8(%arg0: i32) -> (i32, i32) {
    %c0_i32 = arith.constant 0 : i32
    %c0_i32_0 = arith.constant 0 : i32
    %c0_i32_1 = arith.constant 0 : i32
    return %c0_i32, %c0_i32_0 : i32, i32
  }
  func.func @transform_9(%arg0: i32) -> (i32, i32) {
    %c0_i32 = arith.constant 0 : i32
    %c0_i32_0 = arith.constant 0 : i32
    %c0_i32_1 = arith.constant 0 : i32
    return %c0_i32, %c0_i32_0 : i32, i32
  }
  func.func @transform_10(%arg0: i32) -> (i32, i32) {
    %c0_i32 = arith.constant 0 : i32
    %c0_i32_0 = arith.constant 0 : i32
    %c0_i32_1 = arith.constant 0 : i32
    return %c0_i32, %c0_i32_0 : i32, i32
  }
  func.func @transform_11(%arg0: i32) -> (i32, i32) {
    %c0_i32 = arith.constant 0 : i32
    %c0_i32_0 = arith.constant 0 : i32
    %c0_i32_1 = arith.constant 0 : i32
    return %c0_i32, %c0_i32_0 : i32, i32
  }
  func.func @transform_12(%arg0: i32) -> (i32, i32, i32) {
    %c0_i32 = arith.constant 0 : i32
    %c0_i32_0 = arith.constant 0 : i32
    %c0_i32_1 = arith.constant 0 : i32
    return %arg0, %c0_i32, %c0_i32_0 : i32, i32, i32
  }
}

</mosaic_0001>

<llo_original>
// kernel: tpu_custom_call.1
$region0: #{tpu_custom_call.1}
  #allocation0 [shape = 'u32[]', space=smem, size = 0x4, offset = 0x4, fixed_abs, tag = 'smem constant byte address 0x4 - core index']
  #allocation1 [shape = 'u32[72,128]{1,0:T(1,128)}', space=vmem, size = 0x9000, scoped, tag = 'internal scratch']
  #allocation2 [shape = 'f32[4,256]{1,0:T(4,128)}', space=vmem, size = 0x1000, scoped, tag = 'scratch operand']
  %s0 = inlined_call_operand.hbm [shape: f32[2,4,256], index: 0, kind: input, shape index: {}]
  %s1 = inlined_call_operand.vmem [shape: f32[4,4], index: 1, kind: input, shape index: {}]
  %s2 = inlined_call_operand.vmem [shape: f32[4,1], index: 2, kind: input, shape index: {}]
  %s3 = inlined_call_operand.vmem [shape: f32[4,1], index: 3, kind: input, shape index: {}]
  %s4 = inlined_call_operand.vmem [shape: bf16[4,4], index: 4, kind: input, shape index: {}]
  %s5 = inlined_call_operand.vmem [shape: f32[4,1], index: 5, kind: input, shape index: {}]
  %s6 = inlined_call_operand.vmem [shape: bf16[4,4], index: 6, kind: input, shape index: {}]
  %s7 = inlined_call_operand.vmem [shape: f32[4,1], index: 7, kind: input, shape index: {}]
  %s8 = inlined_call_operand.vmem [shape: bf16[4,4], index: 8, kind: input, shape index: {}]
  %s9 = inlined_call_operand.vmem [shape: f32[4,1], index: 9, kind: input, shape index: {}]
  %s10 = inlined_call_operand.vmem [shape: bf16[4,4], index: 10, kind: input, shape index: {}]
  %s11 = inlined_call_operand.vmem [shape: f32[4,1], index: 11, kind: input, shape index: {}]
  %s12 = inlined_call_operand.hbm [shape: f32[2,4,256], index: 12, kind: output, shape index: {}]
  %s13 = sld [smem:[#allocation0]]
  $region85: #{tpu_custom_call.1} parent=0
    _
  %s15 = ssub.s32 1, %s13
  %s16 = scalar_select 0, %s15, %s13
  $region1: #{tpu_custom_call.1} parent=0
    #allocation3 [shape = 'u8[8192]{0}', space=vmem, size = 0x2000, scoped, tag = 'input window, operand 0']
    #allocation4 [shape = 's32[2]{0}', space=sflag, size = 0x8, scoped, tag = 'scoped memory for tpu_custom_call.1']
    #allocation5 [shape = 's32[2]{0}', space=sflag, size = 0x8, scoped, tag = 'scoped memory for tpu_custom_call.1']
    #allocation6 [shape = 'u8[8192]{0}', space=vmem, size = 0x2000, scoped, tag = 'output window, operand 0']
    %17 = vsyncpa [#allocation4], 0
    %s18 = scalar_lea.sflag [#allocation4], 1
    %19 = vsyncpa %s18, 0
    %20 = vsyncpa [#allocation5], 0
    %s21 = scalar_lea.sflag [#allocation5], 1
    %22 = vsyncpa %s21, 0
    loop: start=0, step=1, limit=4
    $region2: #{tpu_custom_call.1} parent=1 // loop_pre_header
      _
    $region3: #{tpu_custom_call.1} parent=1 // loop_header
      %s24 = sphi 0, %s28
      %p25 = scmp.ge.s32.totalorder %s24, 4
      %s34 = sphi 0, %s36
      %s37 = sphi 0, %s34
      %s38 = sphi 0, %s37
      %s54 = sphi 0, %s38
      %s58 = sphi 0, %s58
      %s60 = sphi 0, %s58
      %s61 = sphi 0, %s60
      %s75 = sphi 0, %s61
      %s79 = sphi 0, %s79
      %s81 = sphi 0, %s79
      %s82 = sphi 0, %s81
      %s96 = sphi 0, %s82
      %s100 = sphi 0, %s100
      %s102 = sphi 0, %s100
      %s103 = sphi 0, %s102
      %s117 = sphi 0, %s103
      %s121 = sphi 0, %s121
      %s123 = sphi 0, %s121
      %s124 = sphi 0, %s123
      %s138 = sphi 0, %s124
      %s142 = sphi 0, %s142
      %s144 = sphi 0, %s142
      %s145 = sphi 0, %s144
      %s159 = sphi 0, %s145
      %s163 = sphi 0, %s163
      %s165 = sphi 0, %s163
      %s166 = sphi 0, %s165
      %s180 = sphi 0, %s166
      %s184 = sphi 0, %s184
      %s186 = sphi 0, %s184
      %s187 = sphi 0, %s186
      %s201 = sphi 0, %s187
      %s205 = sphi 0, %s205
      %s207 = sphi 0, %s205
      %s208 = sphi 0, %s207
      %s222 = sphi 0, %s208
      %s226 = sphi 0, %s226
      %s228 = sphi 0, %s226
      %s229 = sphi 0, %s228
      %s243 = sphi 0, %s229
      %s247 = sphi 0, %s247
      %s249 = sphi 0, %s247
      %s250 = sphi 0, %s249
      %s264 = sphi 0, %s250
      %s268 = sphi 0, %s268
      %s270 = sphi 0, %s268
      %s271 = sphi 0, %s270
      %s285 = sphi 0, %s271
      %s291 = sphi 0, %s293
      %s294 = sphi 0, %s291
      %s295 = sphi 0, %s294
      %s311 = sphi 0, %s295
    $region4: #{tpu_custom_call.1} parent=1 // loop_header_branch
      %27 = sbr.rel (%p25) target = $region8
    $region5: #{tpu_custom_call.1} parent=1 // loop_body
      %s29 = ssub.s32 %s24, 1
      %s30 = ssub.s32 %s24, 2
      %s31 = sadd.s32 %s24, 1
      %s32 = ssub.s32 %s24, %s31
      %p33 = scmp.eq.s32.totalorder %s32, 0
      %s35 = sadd.s32 %s34, 1
      %s36 = scalar_select %p33, %s34, %s35
      %p39 = pneg %p33
      %p40 = scmp.eq.s32.totalorder %s24, 1
      %p41 = por %p39, %p40
      %p42 = scmp.ne.s32.totalorder %s34, %s37
      %p43 = scmp.eq.s32.totalorder %s24, 0
      %p44 = por %p42, %p43
      %p45 = scmp.ne.s32.totalorder %s34, %s37
      %p46 = scmp.eq.s32.totalorder %s29, 1
      %p47 = por %p45, %p46
      %p48 = scmp.ne.s32.totalorder %s37, %s38
      %p49 = scmp.eq.s32.totalorder %s29, 0
      %p50 = por %p48, %p49
      %p51 = scmp.ne.s32.totalorder %s37, %s38
      %p52 = scmp.eq.s32.totalorder %s30, 1
      %p53 = por %p51, %p52
      %p55 = scmp.ne.s32.totalorder %s38, %s54
      %p56 = scmp.eq.s32.totalorder %s30, 0
      %p57 = por %p55, %p56
      %s59 = sadd.s32 %s58, 1
      %p62 = scmp.eq.s32.totalorder %s24, 1
      %p63 = scmp.ne.s32.totalorder %s58, %s60
      %p64 = scmp.eq.s32.totalorder %s24, 0
      %p65 = por %p63, %p64
      %p66 = scmp.ne.s32.totalorder %s58, %s60
      %p67 = scmp.eq.s32.totalorder %s29, 1
      %p68 = por %p66, %p67
      %p69 = scmp.ne.s32.totalorder %s60, %s61
      %p70 = scmp.eq.s32.totalorder %s29, 0
      %p71 = por %p69, %p70
      %p72 = scmp.ne.s32.totalorder %s60, %s61
      %p73 = scmp.eq.s32.totalorder %s30, 1
      %p74 = por %p72, %p73
      %p76 = scmp.ne.s32.totalorder %s61, %s75
      %p77 = scmp.eq.s32.totalorder %s30, 0
      %p78 = por %p76, %p77
      %s80 = sadd.s32 %s79, 1
      %p83 = scmp.eq.s32.totalorder %s24, 1
      %p84 = scmp.ne.s32.totalorder %s79, %s81
      %p85 = scmp.eq.s32.totalorder %s24, 0
      %p86 = por %p84, %p85
      %p87 = scmp.ne.s32.totalorder %s79, %s81
      %p88 = scmp.eq.s32.totalorder %s29, 1
      %p89 = por %p87, %p88
      %p90 = scmp.ne.s32.totalorder %s81, %s82
      %p91 = scmp.eq.s32.totalorder %s29, 0
      %p92 = por %p90, %p91
      %p93 = scmp.ne.s32.totalorder %s81, %s82
      %p94 = scmp.eq.s32.totalorder %s30, 1
      %p95 = por %p93, %p94
      %p97 = scmp.ne.s32.totalorder %s82, %s96
      %p98 = scmp.eq.s32.totalorder %s30, 0
      %p99 = por %p97, %p98
      %s101 = sadd.s32 %s100, 1
      %p104 = scmp.eq.s32.totalorder %s24, 1
      %p105 = scmp.ne.s32.totalorder %s100, %s102
      %p106 = scmp.eq.s32.totalorder %s24, 0
      %p107 = por %p105, %p106
      %p108 = scmp.ne.s32.totalorder %s100, %s102
      %p109 = scmp.eq.s32.totalorder %s29, 1
      %p110 = por %p108, %p109
      %p111 = scmp.ne.s32.totalorder %s102, %s103
      %p112 = scmp.eq.s32.totalorder %s29, 0
      %p113 = por %p111, %p112
      %p114 = scmp.ne.s32.totalorder %s102, %s103
      %p115 = scmp.eq.s32.totalorder %s30, 1
      %p116 = por %p114, %p115
      %p118 = scmp.ne.s32.totalorder %s103, %s117
      %p119 = scmp.eq.s32.totalorder %s30, 0
      %p120 = por %p118, %p119
      %s122 = sadd.s32 %s121, 1
      %p125 = scmp.eq.s32.totalorder %s24, 1
      %p126 = scmp.ne.s32.totalorder %s121, %s123
      %p127 = scmp.eq.s32.totalorder %s24, 0
      %p128 = por %p126, %p127
      %p129 = scmp.ne.s32.totalorder %s121, %s123
      %p130 = scmp.eq.s32.totalorder %s29, 1
      %p131 = por %p129, %p130
      %p132 = scmp.ne.s32.totalorder %s123, %s124
      %p133 = scmp.eq.s32.totalorder %s29, 0
      %p134 = por %p132, %p133
      %p135 = scmp.ne.s32.totalorder %s123, %s124
      %p136 = scmp.eq.s32.totalorder %s30, 1
      %p137 = por %p135, %p136
      %p139 = scmp.ne.s32.totalorder %s124, %s138
      %p140 = scmp.eq.s32.totalorder %s30, 0
      %p141 = por %p139, %p140
      %s143 = sadd.s32 %s142, 1
      %p146 = scmp.eq.s32.totalorder %s24, 1
      %p147 = scmp.ne.s32.totalorder %s142, %s144
      %p148 = scmp.eq.s32.totalorder %s24, 0
      %p149 = por %p147, %p148
      %p150 = scmp.ne.s32.totalorder %s142, %s144
      %p151 = scmp.eq.s32.totalorder %s29, 1
      %p152 = por %p150, %p151
      %p153 = scmp.ne.s32.totalorder %s144, %s145
      %p154 = scmp.eq.s32.totalorder %s29, 0
      %p155 = por %p153, %p154
      %p156 = scmp.ne.s32.totalorder %s144, %s145
      %p157 = scmp.eq.s32.totalorder %s30, 1
      %p158 = por %p156, %p157
      %p160 = scmp.ne.s32.totalorder %s145, %s159
      %p161 = scmp.eq.s32.totalorder %s30, 0
      %p162 = por %p160, %p161
      %s164 = sadd.s32 %s163, 1
      %p167 = scmp.eq.s32.totalorder %s24, 1
      %p168 = scmp.ne.s32.totalorder %s163, %s165
      %p169 = scmp.eq.s32.totalorder %s24, 0
      %p170 = por %p168, %p169
      %p171 = scmp.ne.s32.totalorder %s163, %s165
      %p172 = scmp.eq.s32.totalorder %s29, 1
      %p173 = por %p171, %p172
      %p174 = scmp.ne.s32.totalorder %s165, %s166
      %p175 = scmp.eq.s32.totalorder %s29, 0
      %p176 = por %p174, %p175
      %p177 = scmp.ne.s32.totalorder %s165, %s166
      %p178 = scmp.eq.s32.totalorder %s30, 1
      %p179 = por %p177, %p178
      %p181 = scmp.ne.s32.totalorder %s166, %s180
      %p182 = scmp.eq.s32.totalorder %s30, 0
      %p183 = por %p181, %p182
      %s185 = sadd.s32 %s184, 1
      %p188 = scmp.eq.s32.totalorder %s24, 1
      %p189 = scmp.ne.s32.totalorder %s184, %s186
      %p190 = scmp.eq.s32.totalorder %s24, 0
      %p191 = por %p189, %p190
      %p192 = scmp.ne.s32.totalorder %s184, %s186
      %p193 = scmp.eq.s32.totalorder %s29, 1
      %p194 = por %p192, %p193
      %p195 = scmp.ne.s32.totalorder %s186, %s187
      %p196 = scmp.eq.s32.totalorder %s29, 0
      %p197 = por %p195, %p196
      %p198 = scmp.ne.s32.totalorder %s186, %s187
      %p199 = scmp.eq.s32.totalorder %s30, 1
      %p200 = por %p198, %p199
      %p202 = scmp.ne.s32.totalorder %s187, %s201
      %p203 = scmp.eq.s32.totalorder %s30, 0
      %p204 = por %p202, %p203
      %s206 = sadd.s32 %s205, 1
      %p209 = scmp.eq.s32.totalorder %s24, 1
      %p210 = scmp.ne.s32.totalorder %s205, %s207
      %p211 = scmp.eq.s32.totalorder %s24, 0
      %p212 = por %p210, %p211
      %p213 = scmp.ne.s32.totalorder %s205, %s207
      %p214 = scmp.eq.s32.totalorder %s29, 1
      %p215 = por %p213, %p214
      %p216 = scmp.ne.s32.totalorder %s207, %s208
      %p217 = scmp.eq.s32.totalorder %s29, 0
      %p218 = por %p216, %p217
      %p219 = scmp.ne.s32.totalorder %s207, %s208
      %p220 = scmp.eq.s32.totalorder %s30, 1
      %p221 = por %p219, %p220
      %p223 = scmp.ne.s32.totalorder %s208, %s222
      %p224 = scmp.eq.s32.totalorder %s30, 0
      %p225 = por %p223, %p224
      %s227 = sadd.s32 %s226, 1
      %p230 = scmp.eq.s32.totalorder %s24, 1
      %p231 = scmp.ne.s32.totalorder %s226, %s228
      %p232 = scmp.eq.s32.totalorder %s24, 0
      %p233 = por %p231, %p232
      %p234 = scmp.ne.s32.totalorder %s226, %s228
      %p235 = scmp.eq.s32.totalorder %s29, 1
      %p236 = por %p234, %p235
      %p237 = scmp.ne.s32.totalorder %s228, %s229
      %p238 = scmp.eq.s32.totalorder %s29, 0
      %p239 = por %p237, %p238
      %p240 = scmp.ne.s32.totalorder %s228, %s229
      %p241 = scmp.eq.s32.totalorder %s30, 1
      %p242 = por %p240, %p241
      %p244 = scmp.ne.s32.totalorder %s229, %s243
      %p245 = scmp.eq.s32.totalorder %s30, 0
      %p246 = por %p244, %p245
      %s248 = sadd.s32 %s247, 1
      %p251 = scmp.eq.s32.totalorder %s24, 1
      %p252 = scmp.ne.s32.totalorder %s247, %s249
      %p253 = scmp.eq.s32.totalorder %s24, 0
      %p254 = por %p252, %p253
      %p255 = scmp.ne.s32.totalorder %s247, %s249
      %p256 = scmp.eq.s32.totalorder %s29, 1
      %p257 = por %p255, %p256
      %p258 = scmp.ne.s32.totalorder %s249, %s250
      %p259 = scmp.eq.s32.totalorder %s29, 0
      %p260 = por %p258, %p259
      %p261 = scmp.ne.s32.totalorder %s249, %s250
      %p262 = scmp.eq.s32.totalorder %s30, 1
      %p263 = por %p261, %p262
      %p265 = scmp.ne.s32.totalorder %s250, %s264
      %p266 = scmp.eq.s32.totalorder %s30, 0
      %p267 = por %p265, %p266
      %s269 = sadd.s32 %s268, 1
      %p272 = scmp.eq.s32.totalorder %s24, 1
      %p273 = scmp.ne.s32.totalorder %s268, %s270
      %p274 = scmp.eq.s32.totalorder %s24, 0
      %p275 = por %p273, %p274
      %p276 = scmp.ne.s32.totalorder %s268, %s270
      %p277 = scmp.eq.s32.totalorder %s29, 1
      %p278 = por %p276, %p277
      %p279 = scmp.ne.s32.totalorder %s270, %s271
      %p280 = scmp.eq.s32.totalorder %s29, 0
      %p281 = por %p279, %p280
      %p282 = scmp.ne.s32.totalorder %s270, %s271
      %p283 = scmp.eq.s32.totalorder %s30, 1
      %p284 = por %p282, %p283
      %p286 = scmp.ne.s32.totalorder %s271, %s285
      %p287 = scmp.eq.s32.totalorder %s30, 0
      %p288 = por %p286, %p287
      %s289 = ssub.s32 %s24, %s31
      %p290 = scmp.eq.s32.totalorder %s289, 0
      %s292 = sadd.s32 %s291, 1
      %s293 = scalar_select %p290, %s291, %s292
      %p296 = pneg %p290
      %p297 = scmp.eq.s32.totalorder %s24, 1
      %p298 = por %p296, %p297
      %p299 = scmp.ne.s32.totalorder %s291, %s294
      %p300 = scmp.eq.s32.totalorder %s24, 0
      %p301 = por %p299, %p300
      %p302 = scmp.ne.s32.totalorder %s291, %s294
      %p303 = scmp.eq.s32.totalorder %s29, 1
      %p304 = por %p302, %p303
      %p305 = scmp.ne.s32.totalorder %s294, %s295
      %p306 = scmp.eq.s32.totalorder %s29, 0
      %p307 = por %p305, %p306
      %p308 = scmp.ne.s32.totalorder %s294, %s295
      %p309 = scmp.eq.s32.totalorder %s30, 1
      %p310 = por %p308, %p309
      %p312 = scmp.ne.s32.totalorder %s295, %s311
      %p313 = scmp.eq.s32.totalorder %s30, 0
      %p314 = por %p312, %p313
      %p315 = scmp.le.s32.totalorder 1, %s24
      %p316 = scmp.lt.s32.totalorder %s24, 3
      %p317 = pnand %p315, %p316
      %p318 = pneg %p317
      // Predicated region
      $region9: #{tpu_custom_call.1} parent=5 // pred_check
        _
      $region10: #{tpu_custom_call.1} parent=5 // pred_check_branch
        %320 = sbr.rel (%p317) target = $region12
      $region11: #{tpu_custom_call.1} parent=5 // pred_region
        %s321 = ssub.s32 %s24, 1
        // Predicated region
        $region13: #{tpu_custom_call.1} parent=11 // pred_check
          %p322 = pneg %p71
        $region14: #{tpu_custom_call.1} parent=11 // pred_check_branch
          %324 = sbr.rel (%p322) target = $region16
        $region15: #{tpu_custom_call.1} parent=11 // pred_region
          _
        $region16: #{tpu_custom_call.1} parent=11 // pred_fallthru
          _
        // Predicated region
        $region17: #{tpu_custom_call.1} parent=11 // pred_check
          %p325 = pneg %p92
        $region18: #{tpu_custom_call.1} parent=11 // pred_check_branch
          %327 = sbr.rel (%p325) target = $region20
        $region19: #{tpu_custom_call.1} parent=11 // pred_region
          _
        $region20: #{tpu_custom_call.1} parent=11 // pred_fallthru
          _
        // Predicated region
        $region21: #{tpu_custom_call.1} parent=11 // pred_check
          %p328 = pneg %p113
        $region22: #{tpu_custom_call.1} parent=11 // pred_check_branch
          %330 = sbr.rel (%p328) target = $region24
        $region23: #{tpu_custom_call.1} parent=11 // pred_region
          _
        $region24: #{tpu_custom_call.1} parent=11 // pred_fallthru
          _
        // Predicated region
        $region25: #{tpu_custom_call.1} parent=11 // pred_check
          %p331 = pneg %p134
        $region26: #{tpu_custom_call.1} parent=11 // pred_check_branch
          %333 = sbr.rel (%p331) target = $region28
        $region27: #{tpu_custom_call.1} parent=11 // pred_region
          _
        $region28: #{tpu_custom_call.1} parent=11 // pred_fallthru
          _
        // Predicated region
        $region29: #{tpu_custom_call.1} parent=11 // pred_check
          %p334 = pneg %p155
        $region30: #{tpu_custom_call.1} parent=11 // pred_check_branch
          %336 = sbr.rel (%p334) target = $region32
        $region31: #{tpu_custom_call.1} parent=11 // pred_region
          _
        $region32: #{tpu_custom_call.1} parent=11 // pred_fallthru
          _
        // Predicated region
        $region33: #{tpu_custom_call.1} parent=11 // pred_check
          %p337 = pneg %p176
        $region34: #{tpu_custom_call.1} parent=11 // pred_check_branch
          %339 = sbr.rel (%p337) target = $region36
        $region35: #{tpu_custom_call.1} parent=11 // pred_region
          _
        $region36: #{tpu_custom_call.1} parent=11 // pred_fallthru
          _
        // Predicated region
        $region37: #{tpu_custom_call.1} parent=11 // pred_check
          %p340 = pneg %p197
        $region38: #{tpu_custom_call.1} parent=11 // pred_check_branch
          %342 = sbr.rel (%p340) target = $region40
        $region39: #{tpu_custom_call.1} parent=11 // pred_region
          _
        $region40: #{tpu_custom_call.1} parent=11 // pred_fallthru
          _
        // Predicated region
        $region41: #{tpu_custom_call.1} parent=11 // pred_check
          %p343 = pneg %p218
        $region42: #{tpu_custom_call.1} parent=11 // pred_check_branch
          %345 = sbr.rel (%p343) target = $region44
        $region43: #{tpu_custom_call.1} parent=11 // pred_region
          _
        $region44: #{tpu_custom_call.1} parent=11 // pred_fallthru
          _
        // Predicated region
        $region45: #{tpu_custom_call.1} parent=11 // pred_check
          %p346 = pneg %p239
        $region46: #{tpu_custom_call.1} parent=11 // pred_check_branch
          %348 = sbr.rel (%p346) target = $region48
        $region47: #{tpu_custom_call.1} parent=11 // pred_region
          _
        $region48: #{tpu_custom_call.1} parent=11 // pred_fallthru
          _
        // Predicated region
        $region49: #{tpu_custom_call.1} parent=11 // pred_check
          %p349 = pneg %p260
        $region50: #{tpu_custom_call.1} parent=11 // pred_check_branch
          %351 = sbr.rel (%p349) target = $region52
        $region51: #{tpu_custom_call.1} parent=11 // pred_region
          _
        $region52: #{tpu_custom_call.1} parent=11 // pred_fallthru
          _
        // Predicated region
        $region53: #{tpu_custom_call.1} parent=11 // pred_check
          %p352 = pneg %p281
        $region54: #{tpu_custom_call.1} parent=11 // pred_check_branch
          %354 = sbr.rel (%p352) target = $region56
        $region55: #{tpu_custom_call.1} parent=11 // pred_region
          _
        $region56: #{tpu_custom_call.1} parent=11 // pred_fallthru
          _
      $region12: #{tpu_custom_call.1} parent=5 // pred_fallthru
        _
      %p355 = scmp.lt.s32.totalorder %s24, 2
      // Predicated region
      $region57: #{tpu_custom_call.1} parent=5 // pred_check
        %p356 = pneg %p355
      $region58: #{tpu_custom_call.1} parent=5 // pred_check_branch
        %358 = sbr.rel (%p356) target = $region60
      $region59: #{tpu_custom_call.1} parent=5 // pred_region
        // Predicated region
        $region61: #{tpu_custom_call.1} parent=59 // pred_check
          %p359 = pneg %p44
        $region62: #{tpu_custom_call.1} parent=59 // pred_check_branch
          %361 = sbr.rel (%p359) target = $region64
        $region63: #{tpu_custom_call.1} parent=59 // pred_region
          %s362 = sand.u32 %s34, 1
          %s363 = scalar_lea.sflag [#allocation4], %s362
          %s364 = sand.u32 %s34, 1
          %s365 = smul.addr %s364, 8
          %s366 = scalar_lea.vmem [#allocation3], %s365
          %368 = vsyncadd %s363, 0
          %s369 = smul.addr %s24, 2
          %s370 = smul.addr %s369, 4
          %s371 = scalar_lea.hbm %s0, %s370
          %s373 = sshll.u32 %s371, 4
          %s374 = int_to_ptr.hbm [resolvable:$true] %s373
          %s375 = sshll.u32 %s366, 4
          %s376 = int_to_ptr.vmem [resolvable:$true] %s375
          %378 = dma.hbm_to_vmem [thread:$0]  %s374, 128, %s376, %s363
        $region64: #{tpu_custom_call.1} parent=59 // pred_fallthru
          _
      $region60: #{tpu_custom_call.1} parent=5 // pred_fallthru
        _
      %p379 = scmp.le.s32.totalorder 1, %s24
      %p380 = scmp.lt.s32.totalorder %s24, 3
      %p381 = pnand %p379, %p380
      %p382 = pneg %p381
      // Predicated region
      $region65: #{tpu_custom_call.1} parent=5 // pred_check
        _
      $region66: #{tpu_custom_call.1} parent=5 // pred_check_branch
        %384 = sbr.rel (%p381) target = $region68
      $region67: #{tpu_custom_call.1} parent=5 // pred_region
        %s385 = ssub.s32 %s24, 1
        %s386 = sand.u32 %s37, 1
        %s387 = scalar_lea.sflag [#allocation4], %s386
        %s388 = sand.u32 %s37, 1
        %s389 = smul.addr %s388, 8
        %s390 = scalar_lea.vmem [#allocation3], %s389
        // Predicated region
        $region69: #{tpu_custom_call.1} parent=67 // pred_check
          %p391 = pneg %p50
        $region70: #{tpu_custom_call.1} parent=67 // pred_check_branch
          %393 = sbr.rel (%p391) target = $region72
        $region71: #{tpu_custom_call.1} parent=67 // pred_region
          %395 = dma.done %s387, 128
        $region72: #{tpu_custom_call.1} parent=67 // pred_fallthru
          _
        %s396 = sand.u32 %s37, 1
        %s397 = scalar_lea.sflag [#allocation4], %s396
        %s398 = sand.u32 %s37, 1
        %s399 = smul.addr %s398, 8
        %s400 = scalar_lea.vmem [#allocation3], %s399
        %p401 = pneg %p50
        %p402 = pneg %p47
        %p403 = pneg %p71
        %p404 = pneg %p68
        %p405 = pneg %p92
        %p406 = pneg %p89
        %p407 = pneg %p113
        %p408 = pneg %p110
        %p409 = pneg %p134
        %p410 = pneg %p131
        %p411 = pneg %p155
        %p412 = pneg %p152
        %p413 = pneg %p176
        %p414 = pneg %p173
        %p415 = pneg %p197
        %p416 = pneg %p194
        %p417 = pneg %p218
        %p418 = pneg %p215
        %p419 = pneg %p239
        %p420 = pneg %p236
        %p421 = pneg %p260
        %p422 = pneg %p257
        %p423 = pneg %p281
        %p424 = pneg %p278
        %p425 = pneg %p307
        %p426 = pneg %p304
        %s427 = sand.u32 %s294, 1
        %s428 = scalar_lea.sflag [#allocation5], %s427
        %s429 = sand.u32 %s294, 1
        %s430 = smul.addr %s429, 8
        %s431 = scalar_lea.vmem [#allocation6], %s430
        %v434 = vld [vmem:[%s390] sm:$0xff]
        %436 = vst [vmem:[#allocation1] ss:$2 sm:$0xff] %v434
        %v437 = vld.sshfl [vmem:[#allocation1] sm:$0xff pattern:$0x75316420]
        %v438 = vld.sshfl [vmem:[#allocation1 + $0x8] sm:$0xff pattern:$0x75316420]
        %vm441 = vcmask 1043456
        %v442 = vsel %vm441, %v437, 0.0
        %v443 = vsel %vm441, %v438, 0.0
        %v444 = vadd.f32 %v442, %v443
        %445 = vadd.xlane.f32.xlu0 %v444
        %v446 = vpop.xlane.xlu0 %445
        %v447 = vmul.f32 %v446, 0.00390625
        %v448 = vmul.f32 %v434, %v434
        %450 = vst [vmem:[#allocation1] ss:$2 sm:$0xff] %v448
        %v451 = vld.sshfl [vmem:[#allocation1] sm:$0xff pattern:$0x75316420]
        %v452 = vld.sshfl [vmem:[#allocation1 + $0x8] sm:$0xff pattern:$0x75316420]
        %v455 = vsel %vm441, %v451, 0.0
        %v456 = vsel %vm441, %v452, 0.0
        %v457 = vadd.f32 %v455, %v456
        %458 = vadd.xlane.f32.xlu0 %v457
        %v459 = vpop.xlane.xlu0 %458
        %v460 = vmul.f32 %v459, 0.00390625
        %v461 = vld [vmem:[%s1] sm:$0xf]
        %vm462 = vcmask 31744
        %v464 = vsel %vm462, %v461, 0
        %v467 = vsel %vm441, %v447, 0
        %469 = vmatpush.msra.mxu0 0.0
        %470 = vmatpush.msra.mxu0 0.0
        %471 = vmatpush.msra.mxu0 0.0
        %472 = vmatpush.msra.mxu0 0.0
        %473 = vmatpush.msra.mxu0 0.0
        %474 = vmatpush.msra.mxu0 0.0
        %475 = vmatpush.msra.mxu0 0.0
        %476 = vmatpush.msra.mxu0 0.0
        %477 = vmatpush.msra.mxu0 0.0
        %478 = vmatpush.msra.mxu0 0.0
        %479 = vmatpush.msra.mxu0 0.0
        %480 = vmatpush.msra.mxu0 0.0
        %481 = vmatpush.msra.mxu0 0.0
        %482 = vmatpush.msra.mxu0 0.0
        %483 = vmatpush.msra.mxu0 0.0
        %v484 = vand.u32 %v467, 4294901760
        %485 = vmatpush.msra.mxu0 %v484
        %v486 = vand.u32 %v464, 4294901760
        %v487 = vsub.f32 %v464, %v486
        %v488 = vand.u32 %v487, 4294901760
        %v489 = vsub.f32 %v487, %v488
        %v490 = vand.u32 %v489, 4294901760
        %491 = vmatmul.f32.gmra.mxu0 %v490
        %v492 = vpop.f32.mrf.mxu0
        %v493 = vadd.f32 0.0, %v492
        %494 = vdwg.mxu0
        %495 = vmatpush.msra.mxu0 0.0
        %496 = vmatpush.msra.mxu0 0.0
        %497 = vmatpush.msra.mxu0 0.0
        %498 = vmatpush.msra.mxu0 0.0
        %499 = vmatpush.msra.mxu0 0.0
        %500 = vmatpush.msra.mxu0 0.0
        %501 = vmatpush.msra.mxu0 0.0
        %502 = vmatpush.msra.mxu0 0.0
        %503 = vmatpush.msra.mxu0 0.0
        %504 = vmatpush.msra.mxu0 0.0
        %505 = vmatpush.msra.mxu0 0.0
        %506 = vmatpush.msra.mxu0 0.0
        %507 = vmatpush.msra.mxu0 0.0
        %508 = vmatpush.msra.mxu0 0.0
        %509 = vmatpush.msra.mxu0 0.0
        %v510 = vand.u32 %v467, 4294901760
        %v511 = vsub.f32 %v467, %v510
        %v512 = vand.u32 %v511, 4294901760
        %v513 = vsub.f32 %v511, %v512
        %v514 = vand.u32 %v513, 4294901760
        %515 = vmatpush.msra.mxu0 %v514
        %v516 = vand.u32 %v464, 4294901760
        %517 = vmatmul.f32.gmra.mxu0 %v516
        %v518 = vpop.f32.mrf.mxu0
        %v519 = vadd.f32 %v493, %v518
        %520 = vdwg.mxu0
        %521 = vmatpush.msra.mxu0 0.0
        %522 = vmatpush.msra.mxu0 0.0
        %523 = vmatpush.msra.mxu0 0.0
        %524 = vmatpush.msra.mxu0 0.0
        %525 = vmatpush.msra.mxu0 0.0
        %526 = vmatpush.msra.mxu0 0.0
        %527 = vmatpush.msra.mxu0 0.0
        %528 = vmatpush.msra.mxu0 0.0
        %529 = vmatpush.msra.mxu0 0.0
        %530 = vmatpush.msra.mxu0 0.0
        %531 = vmatpush.msra.mxu0 0.0
        %532 = vmatpush.msra.mxu0 0.0
        %533 = vmatpush.msra.mxu0 0.0
        %534 = vmatpush.msra.mxu0 0.0
        %535 = vmatpush.msra.mxu0 0.0
        %v536 = vand.u32 %v467, 4294901760
        %v537 = vsub.f32 %v467, %v536
        %538 = vmatpush.msra.mxu0 %v537
        %v539 = vand.u32 %v464, 4294901760
        %v540 = vsub.f32 %v464, %v539
        %541 = vmatmul.f32.gmra.mxu0 %v540
        %v542 = vpop.f32.mrf.mxu0
        %v543 = vadd.f32 %v519, %v542
        %544 = vdwg.mxu0
        %545 = vmatpush.msra.mxu0 0.0
        %546 = vmatpush.msra.mxu0 0.0
        %547 = vmatpush.msra.mxu0 0.0
        %548 = vmatpush.msra.mxu0 0.0
        %549 = vmatpush.msra.mxu0 0.0
        %550 = vmatpush.msra.mxu0 0.0
        %551 = vmatpush.msra.mxu0 0.0
        %552 = vmatpush.msra.mxu0 0.0
        %553 = vmatpush.msra.mxu0 0.0
        %554 = vmatpush.msra.mxu0 0.0
        %555 = vmatpush.msra.mxu0 0.0
        %556 = vmatpush.msra.mxu0 0.0
        %557 = vmatpush.msra.mxu0 0.0
        %558 = vmatpush.msra.mxu0 0.0
        %559 = vmatpush.msra.mxu0 0.0
        %v560 = vand.u32 %v467, 4294901760
        %561 = vmatpush.msra.mxu0 %v560
        %v562 = vand.u32 %v464, 4294901760
        %v563 = vsub.f32 %v464, %v562
        %v564 = vand.u32 %v563, 4294901760
        %565 = vmatmul.f32.gmra.mxu0 %v564
        %v566 = vpop.f32.mrf.mxu0
        %v567 = vadd.f32 %v543, %v566
        %568 = vdwg.mxu0
        %569 = vmatpush.msra.mxu0 0.0
        %570 = vmatpush.msra.mxu0 0.0
        %571 = vmatpush.msra.mxu0 0.0
        %572 = vmatpush.msra.mxu0 0.0
        %573 = vmatpush.msra.mxu0 0.0
        %574 = vmatpush.msra.mxu0 0.0
        %575 = vmatpush.msra.mxu0 0.0
        %576 = vmatpush.msra.mxu0 0.0
        %577 = vmatpush.msra.mxu0 0.0
        %578 = vmatpush.msra.mxu0 0.0
        %579 = vmatpush.msra.mxu0 0.0
        %580 = vmatpush.msra.mxu0 0.0
        %581 = vmatpush.msra.mxu0 0.0
        %582 = vmatpush.msra.mxu0 0.0
        %583 = vmatpush.msra.mxu0 0.0
        %v584 = vand.u32 %v467, 4294901760
        %v585 = vsub.f32 %v467, %v584
        %v586 = vand.u32 %v585, 4294901760
        %587 = vmatpush.msra.mxu0 %v586
        %v588 = vand.u32 %v464, 4294901760
        %589 = vmatmul.f32.gmra.mxu0 %v588
        %v590 = vpop.f32.mrf.mxu0
        %v591 = vadd.f32 %v567, %v590
        %592 = vdwg.mxu0
        %593 = vmatpush.msra.mxu0 0.0
        %594 = vmatpush.msra.mxu0 0.0
        %595 = vmatpush.msra.mxu0 0.0
        %596 = vmatpush.msra.mxu0 0.0
        %597 = vmatpush.msra.mxu0 0.0
        %598 = vmatpush.msra.mxu0 0.0
        %599 = vmatpush.msra.mxu0 0.0
        %600 = vmatpush.msra.mxu0 0.0
        %601 = vmatpush.msra.mxu0 0.0
        %602 = vmatpush.msra.mxu0 0.0
        %603 = vmatpush.msra.mxu0 0.0
        %604 = vmatpush.msra.mxu0 0.0
        %605 = vmatpush.msra.mxu0 0.0
        %606 = vmatpush.msra.mxu0 0.0
        %607 = vmatpush.msra.mxu0 0.0
        %v608 = vand.u32 %v467, 4294901760
        %609 = vmatpush.msra.mxu0 %v608
        %v610 = vand.u32 %v464, 4294901760
        %611 = vmatmul.f32.gmra.mxu0 %v610
        %v612 = vpop.f32.mrf.mxu0
        %v613 = vadd.f32 %v591, %v612
        %614 = vdwg.mxu0
        %v616 = vsel %vm441, %v460, 0
        %618 = vmatpush.msra.mxu0 0.0
        %619 = vmatpush.msra.mxu0 0.0
        %620 = vmatpush.msra.mxu0 0.0
        %621 = vmatpush.msra.mxu0 0.0
        %622 = vmatpush.msra.mxu0 0.0
        %623 = vmatpush.msra.mxu0 0.0
        %624 = vmatpush.msra.mxu0 0.0
        %625 = vmatpush.msra.mxu0 0.0
        %626 = vmatpush.msra.mxu0 0.0
        %627 = vmatpush.msra.mxu0 0.0
        %628 = vmatpush.msra.mxu0 0.0
        %629 = vmatpush.msra.mxu0 0.0
        %630 = vmatpush.msra.mxu0 0.0
        %631 = vmatpush.msra.mxu0 0.0
        %632 = vmatpush.msra.mxu0 0.0
        %v633 = vand.u32 %v616, 4294901760
        %634 = vmatpush.msra.mxu0 %v633
        %v635 = vand.u32 %v464, 4294901760
        %v636 = vsub.f32 %v464, %v635
        %v637 = vand.u32 %v636, 4294901760
        %v638 = vsub.f32 %v636, %v637
        %v639 = vand.u32 %v638, 4294901760
        %640 = vmatmul.f32.gmra.mxu0 %v639
        %v641 = vpop.f32.mrf.mxu0
        %v642 = vadd.f32 0.0, %v641
        %643 = vdwg.mxu0
        %644 = vmatpush.msra.mxu0 0.0
        %645 = vmatpush.msra.mxu0 0.0
        %646 = vmatpush.msra.mxu0 0.0
        %647 = vmatpush.msra.mxu0 0.0
        %648 = vmatpush.msra.mxu0 0.0
        %649 = vmatpush.msra.mxu0 0.0
        %650 = vmatpush.msra.mxu0 0.0
        %651 = vmatpush.msra.mxu0 0.0
        %652 = vmatpush.msra.mxu0 0.0
        %653 = vmatpush.msra.mxu0 0.0
        %654 = vmatpush.msra.mxu0 0.0
        %655 = vmatpush.msra.mxu0 0.0
        %656 = vmatpush.msra.mxu0 0.0
        %657 = vmatpush.msra.mxu0 0.0
        %658 = vmatpush.msra.mxu0 0.0
        %v659 = vand.u32 %v616, 4294901760
        %v660 = vsub.f32 %v616, %v659
        %v661 = vand.u32 %v660, 4294901760
        %v662 = vsub.f32 %v660, %v661
        %v663 = vand.u32 %v662, 4294901760
        %664 = vmatpush.msra.mxu0 %v663
        %v665 = vand.u32 %v464, 4294901760
        %666 = vmatmul.f32.gmra.mxu0 %v665
        %v667 = vpop.f32.mrf.mxu0
        %v668 = vadd.f32 %v642, %v667
        %669 = vdwg.mxu0
        %670 = vmatpush.msra.mxu0 0.0
        %671 = vmatpush.msra.mxu0 0.0
        %672 = vmatpush.msra.mxu0 0.0
        %673 = vmatpush.msra.mxu0 0.0
        %674 = vmatpush.msra.mxu0 0.0
        %675 = vmatpush.msra.mxu0 0.0
        %676 = vmatpush.msra.mxu0 0.0
        %677 = vmatpush.msra.mxu0 0.0
        %678 = vmatpush.msra.mxu0 0.0
        %679 = vmatpush.msra.mxu0 0.0
        %680 = vmatpush.msra.mxu0 0.0
        %681 = vmatpush.msra.mxu0 0.0
        %682 = vmatpush.msra.mxu0 0.0
        %683 = vmatpush.msra.mxu0 0.0
        %684 = vmatpush.msra.mxu0 0.0
        %v685 = vand.u32 %v616, 4294901760
        %v686 = vsub.f32 %v616, %v685
        %687 = vmatpush.msra.mxu0 %v686
        %v688 = vand.u32 %v464, 4294901760
        %v689 = vsub.f32 %v464, %v688
        %690 = vmatmul.f32.gmra.mxu0 %v689
        %v691 = vpop.f32.mrf.mxu0
        %v692 = vadd.f32 %v668, %v691
        %693 = vdwg.mxu0
        %694 = vmatpush.msra.mxu0 0.0
        %695 = vmatpush.msra.mxu0 0.0
        %696 = vmatpush.msra.mxu0 0.0
        %697 = vmatpush.msra.mxu0 0.0
        %698 = vmatpush.msra.mxu0 0.0
        %699 = vmatpush.msra.mxu0 0.0
        %700 = vmatpush.msra.mxu0 0.0
        %701 = vmatpush.msra.mxu0 0.0
        %702 = vmatpush.msra.mxu0 0.0
        %703 = vmatpush.msra.mxu0 0.0
        %704 = vmatpush.msra.mxu0 0.0
        %705 = vmatpush.msra.mxu0 0.0
        %706 = vmatpush.msra.mxu0 0.0
        %707 = vmatpush.msra.mxu0 0.0
        %708 = vmatpush.msra.mxu0 0.0
        %v709 = vand.u32 %v616, 4294901760
        %710 = vmatpush.msra.mxu0 %v709
        %v711 = vand.u32 %v464, 4294901760
        %v712 = vsub.f32 %v464, %v711
        %v713 = vand.u32 %v712, 4294901760
        %714 = vmatmul.f32.gmra.mxu0 %v713
        %v715 = vpop.f32.mrf.mxu0
        %v716 = vadd.f32 %v692, %v715
        %717 = vdwg.mxu0
        %718 = vmatpush.msra.mxu0 0.0
        %719 = vmatpush.msra.mxu0 0.0
        %720 = vmatpush.msra.mxu0 0.0
        %721 = vmatpush.msra.mxu0 0.0
        %722 = vmatpush.msra.mxu0 0.0
        %723 = vmatpush.msra.mxu0 0.0
        %724 = vmatpush.msra.mxu0 0.0
        %725 = vmatpush.msra.mxu0 0.0
        %726 = vmatpush.msra.mxu0 0.0
        %727 = vmatpush.msra.mxu0 0.0
        %728 = vmatpush.msra.mxu0 0.0
        %729 = vmatpush.msra.mxu0 0.0
        %730 = vmatpush.msra.mxu0 0.0
        %731 = vmatpush.msra.mxu0 0.0
        %732 = vmatpush.msra.mxu0 0.0
        %v733 = vand.u32 %v616, 4294901760
        %v734 = vsub.f32 %v616, %v733
        %v735 = vand.u32 %v734, 4294901760
        %736 = vmatpush.msra.mxu0 %v735
        %v737 = vand.u32 %v464, 4294901760
        %738 = vmatmul.f32.gmra.mxu0 %v737
        %v739 = vpop.f32.mrf.mxu0
        %v740 = vadd.f32 %v716, %v739
        %741 = vdwg.mxu0
        %742 = vmatpush.msra.mxu0 0.0
        %743 = vmatpush.msra.mxu0 0.0
        %744 = vmatpush.msra.mxu0 0.0
        %745 = vmatpush.msra.mxu0 0.0
        %746 = vmatpush.msra.mxu0 0.0
        %747 = vmatpush.msra.mxu0 0.0
        %748 = vmatpush.msra.mxu0 0.0
        %749 = vmatpush.msra.mxu0 0.0
        %750 = vmatpush.msra.mxu0 0.0
        %751 = vmatpush.msra.mxu0 0.0
        %752 = vmatpush.msra.mxu0 0.0
        %753 = vmatpush.msra.mxu0 0.0
        %754 = vmatpush.msra.mxu0 0.0
        %755 = vmatpush.msra.mxu0 0.0
        %756 = vmatpush.msra.mxu0 0.0
        %v757 = vand.u32 %v616, 4294901760
        %758 = vmatpush.msra.mxu0 %v757
        %v759 = vand.u32 %v464, 4294901760
        %760 = vmatmul.f32.gmra.mxu0 %v759
        %v761 = vpop.f32.mrf.mxu0
        %v762 = vadd.f32 %v740, %v761
        %763 = vdwg.mxu0
        %v764 = vmul.f32 %v613, %v613
        %v765 = vsub.f32 %v762, %v764
        %v766 = vmax.f32 %v765, 0.0
        %v767 = vadd.f32 %v766, 1e-06
        %v768 = vrsqrt.pop %v767
        %v769 = vmul.f32 %v768, %v767
        %v770 = vmul.f32 %v769, %v768
        %v771 = vmul.f32 0.5, %v770
        %v772 = vsub.f32 1.5, %v771
        %v773 = vmul.f32 %v768, %v772
        %vm774 = vweird.f32 %v767
        %vm775 = vweird.f32 %v768
        %vm776 = vmor %vm774, %vm775
        %v777 = vsel %vm776, %v768, %v773
        %779 = vset.pattern.permute.xlu0 0
        %780 = vperm.xlu0 %779, %v613
        %v781 = vpop.permute.xlu0 %780
        %v783 = vunpack.c.l.s4 839922192
        %v784 = vunpack.c.0.s8 %v783
        %v785 = vperm.slane %v781, %v784
        %v787 = vsub.f32 %v434, %v785
        %789 = vset.pattern.permute.xlu0 0
        %790 = vperm.xlu0 %789, %v777
        %v791 = vpop.permute.xlu0 %790
        %v793 = vunpack.c.l.s4 839922192
        %v794 = vunpack.c.0.s8 %v793
        %v795 = vperm.slane %v791, %v794
        %v797 = vmul.f32 %v787, %v795
        %v798 = vld [vmem:[%s2] sm:$0xf]
        %800 = vset.pattern.permute.xlu0 0
        %801 = vperm.xlu0 %800, %v798
        %v802 = vpop.permute.xlu0 %801
        %v804 = vunpack.c.l.s4 839922192
        %v805 = vunpack.c.0.s8 %v804
        %v806 = vperm.slane %v802, %v805
        %v808 = vmul.f32 %v797, %v806
        %v809 = vld [vmem:[%s3] sm:$0xf]
        %811 = vset.pattern.permute.xlu0 0
        %812 = vperm.xlu0 %811, %v809
        %v813 = vpop.permute.xlu0 %812
        %v815 = vunpack.c.l.s4 839922192
        %v816 = vunpack.c.0.s8 %v815
        %v817 = vperm.slane %v813, %v816
        %v819 = vadd.f32 %v808, %v817
        %821 = vst [vmem:[#allocation1] ss:$2 sm:$0xff] %v819
        %v822 = vld.sshfl [vmem:[#allocation1] sm:$0xff pattern:$0x75316420]
        %v823 = vld.sshfl [vmem:[#allocation1 + $0x8] sm:$0xff pattern:$0x75316420]
        %v826 = vpack.c.bf16 %v822, %v822
        %v827 = vpack.c.bf16 %v823, %v823
        %v828 = vld [vmem:[%s4] sm:$0x3]
        %v829 = vld [vmem:[%s5] sm:$0xf]
        %831 = vset.pattern.permute.xlu0 0
        %832 = vperm.xlu0 %831, %v829
        %v833 = vpop.permute.xlu0 %832
        %v836 = vsel %vm462, %v828, 0
        %vm838 = vcmask 1041408
        %v840 = vsel %vm838, %v826, 0
        %v843 = vsel %vm838, %v827, 0
        %845 = vmatpush.bf16.msra.mxu0 0
        %846 = vmatpush.bf16.msra.mxu0 0
        %847 = vmatpush.bf16.msra.mxu0 0
        %848 = vmatpush.bf16.msra.mxu0 0
        %849 = vmatpush.bf16.msra.mxu0 0
        %850 = vmatpush.bf16.msra.mxu0 0
        %851 = vmatpush.bf16.msra.mxu0 0
        %852 = vmatpush.bf16.msra.mxu0 %v840
        %853 = vmatmul.bf16.gmra.mxu0 %v836
        %v854 = vpop.f32.mrf.mxu0
        %v855 = vadd.f32 %v833, %v854
        %v856 = vpop.f32.mrf.mxu0
        %857 = vdwg.mxu0
        %858 = vmatpush.bf16.msra.mxu0 0
        %859 = vmatpush.bf16.msra.mxu0 0
        %860 = vmatpush.bf16.msra.mxu0 0
        %861 = vmatpush.bf16.msra.mxu0 0
        %862 = vmatpush.bf16.msra.mxu0 0
        %863 = vmatpush.bf16.msra.mxu0 0
        %864 = vmatpush.bf16.msra.mxu0 0
        %865 = vmatpush.bf16.msra.mxu0 %v843
        %866 = vmatmul.bf16.gmra.mxu0 %v836
        %v867 = vpop.f32.mrf.mxu0
        %v868 = vadd.f32 %v833, %v867
        %v869 = vpop.f32.mrf.mxu0
        %870 = vdwg.mxu0
        %v871 = vld [vmem:[%s6] sm:$0x3]
        %v872 = vld [vmem:[%s7] sm:$0xf]
        %874 = vset.pattern.permute.xlu0 0
        %875 = vperm.xlu0 %874, %v872
        %v876 = vpop.permute.xlu0 %875
        %v879 = vsel %vm462, %v871, 0
        %881 = vmatpush.bf16.msra.mxu0 0
        %882 = vmatpush.bf16.msra.mxu0 0
        %883 = vmatpush.bf16.msra.mxu0 0
        %884 = vmatpush.bf16.msra.mxu0 0
        %885 = vmatpush.bf16.msra.mxu0 0
        %886 = vmatpush.bf16.msra.mxu0 0
        %887 = vmatpush.bf16.msra.mxu0 0
        %888 = vmatpush.bf16.msra.mxu0 %v840
        %889 = vmatmul.bf16.gmra.mxu0 %v879
        %v890 = vpop.f32.mrf.mxu0
        %v891 = vadd.f32 %v876, %v890
        %v892 = vpop.f32.mrf.mxu0
        %893 = vdwg.mxu0
        %894 = vmatpush.bf16.msra.mxu0 0
        %895 = vmatpush.bf16.msra.mxu0 0
        %896 = vmatpush.bf16.msra.mxu0 0
        %897 = vmatpush.bf16.msra.mxu0 0
        %898 = vmatpush.bf16.msra.mxu0 0
        %899 = vmatpush.bf16.msra.mxu0 0
        %900 = vmatpush.bf16.msra.mxu0 0
        %901 = vmatpush.bf16.msra.mxu0 %v843
        %902 = vmatmul.bf16.gmra.mxu0 %v879
        %v903 = vpop.f32.mrf.mxu0
        %v904 = vadd.f32 %v876, %v903
        %v905 = vpop.f32.mrf.mxu0
        %906 = vdwg.mxu0
        %v907 = vld [vmem:[%s8] sm:$0x3]
        %v908 = vld [vmem:[%s9] sm:$0xf]
        %910 = vset.pattern.permute.xlu0 0
        %911 = vperm.xlu0 %910, %v908
        %v912 = vpop.permute.xlu0 %911
        %v915 = vsel %vm462, %v907, 0
        %917 = vmatpush.bf16.msra.mxu0 0
        %918 = vmatpush.bf16.msra.mxu0 0
        %919 = vmatpush.bf16.msra.mxu0 0
        %920 = vmatpush.bf16.msra.mxu0 0
        %921 = vmatpush.bf16.msra.mxu0 0
        %922 = vmatpush.bf16.msra.mxu0 0
        %923 = vmatpush.bf16.msra.mxu0 0
        %924 = vmatpush.bf16.msra.mxu0 %v840
        %925 = vmatmul.bf16.gmra.mxu0 %v915
        %v926 = vpop.f32.mrf.mxu0
        %v927 = vadd.f32 %v912, %v926
        %v928 = vpop.f32.mrf.mxu0
        %929 = vdwg.mxu0
        %930 = vmatpush.bf16.msra.mxu0 0
        %931 = vmatpush.bf16.msra.mxu0 0
        %932 = vmatpush.bf16.msra.mxu0 0
        %933 = vmatpush.bf16.msra.mxu0 0
        %934 = vmatpush.bf16.msra.mxu0 0
        %935 = vmatpush.bf16.msra.mxu0 0
        %936 = vmatpush.bf16.msra.mxu0 0
        %937 = vmatpush.bf16.msra.mxu0 %v843
        %938 = vmatmul.bf16.gmra.mxu0 %v915
        %v939 = vpop.f32.mrf.mxu0
        %v940 = vadd.f32 %v912, %v939
        %v941 = vpop.f32.mrf.mxu0
        %942 = vdwg.mxu0
        %v943 = vpack.c.bf16 %v855, %v855
        %v944 = vpack.c.bf16 %v868, %v868
        %v945 = vpack.c.bf16 %v891, %v891
        %v946 = vpack.c.bf16 %v904, %v904
        %v947 = vpack.c.bf16 %v927, %v927
        %v948 = vpack.c.bf16 %v940, %v940
        %949 = vxpose.binary.xlu0.c.b16.start [1/16] %v944, %v943, 128
        %950 = vxpose.binary.xlu0.c.b16.cont [2/16] 0, 0, 128
        %951 = vxpose.binary.xlu0.c.b16.cont [3/16] 0, 0, 128
        %952 = vxpose.binary.xlu0.c.b16.cont [4/16] 0, 0, 128
        %953 = vxpose.binary.xlu0.c.b16.cont [5/16] 0, 0, 128
        %954 = vxpose.binary.xlu0.c.b16.cont [6/16] 0, 0, 128
        %955 = vxpose.binary.xlu0.c.b16.cont [7/16] 0, 0, 128
        %956 = vxpose.binary.xlu0.c.b16.end [8/16] 0, 0, 128
        %v957 = vpop.trf.xlu0
        %v958 = vpop.trf.xlu0
        %v959 = vpop.trf.xlu0
        %v960 = vpop.trf.xlu0
        %v961 = vpop.trf.xlu0
        %v962 = vpop.trf.xlu0
        %v963 = vpop.trf.xlu0
        %v964 = vpop.trf.xlu0
        %v965 = vpop.trf.xlu0
        %v966 = vpop.trf.xlu0
        %v967 = vpop.trf.xlu0
        %v968 = vpop.trf.xlu0
        %v969 = vpop.trf.xlu0
        %v970 = vpop.trf.xlu0
        %v971 = vpop.trf.xlu0
        %v972 = vpop.trf.xlu0
        %v974 = vsel %vm462, %v957, 0
        %v977 = vsel %vm462, %v959, 0
        %v980 = vsel %vm462, %v961, 0
        %v983 = vsel %vm462, %v963, 0
        %v986 = vsel %vm462, %v965, 0
        %v989 = vsel %vm462, %v967, 0
        %v992 = vsel %vm462, %v969, 0
        %v995 = vsel %vm462, %v971, 0
        %v998 = vsel %vm462, %v958, 0
        %v1001 = vsel %vm462, %v960, 0
        %v1004 = vsel %vm462, %v962, 0
        %v1007 = vsel %vm462, %v964, 0
        %v1010 = vsel %vm462, %v966, 0
        %v1013 = vsel %vm462, %v968, 0
        %v1016 = vsel %vm462, %v970, 0
        %v1019 = vsel %vm462, %v972, 0
        %v1022 = vsel %vm838, %v945, 0
        %v1025 = vsel %vm838, %v946, 0
        %1027 = vmatpush.bf16.msra.mxu0 0
        %1028 = vmatpush.bf16.msra.mxu0 0
        %1029 = vmatpush.bf16.msra.mxu0 0
        %1030 = vmatpush.bf16.msra.mxu0 0
        %1031 = vmatpush.bf16.msra.mxu0 0
        %1032 = vmatpush.bf16.msra.mxu0 0
        %1033 = vmatpush.bf16.msra.mxu0 0
        %1034 = vmatpush.bf16.msra.mxu0 %v1022
        %1035 = vmatmul.bf16.gmra.mxu0 %v974
        %v1036 = vpop.f32.mrf.mxu0
        %v1037 = vadd.f32 0.0, %v1036
        %v1038 = vpop.f32.mrf.mxu0
        %v1039 = vadd.f32 0.0, %v1038
        %1040 = vmatmul.bf16.gmra.mxu0 %v977
        %v1041 = vpop.f32.mrf.mxu0
        %v1042 = vadd.f32 0.0, %v1041
        %v1043 = vpop.f32.mrf.mxu0
        %v1044 = vadd.f32 0.0, %v1043
        %1045 = vmatmul.bf16.gmra.mxu0 %v980
        %v1046 = vpop.f32.mrf.mxu0
        %v1047 = vadd.f32 0.0, %v1046
        %v1048 = vpop.f32.mrf.mxu0
        %v1049 = vadd.f32 0.0, %v1048
        %1050 = vmatmul.bf16.gmra.mxu0 %v983
        %v1051 = vpop.f32.mrf.mxu0
        %v1052 = vadd.f32 0.0, %v1051
        %v1053 = vpop.f32.mrf.mxu0
        %v1054 = vadd.f32 0.0, %v1053
        %1055 = vmatmul.bf16.gmra.mxu0 %v986
        %v1056 = vpop.f32.mrf.mxu0
        %v1057 = vadd.f32 0.0, %v1056
        %v1058 = vpop.f32.mrf.mxu0
        %v1059 = vadd.f32 0.0, %v1058
        %1060 = vmatmul.bf16.gmra.mxu0 %v989
        %v1061 = vpop.f32.mrf.mxu0
        %v1062 = vadd.f32 0.0, %v1061
        %v1063 = vpop.f32.mrf.mxu0
        %v1064 = vadd.f32 0.0, %v1063
        %1065 = vmatmul.bf16.gmra.mxu0 %v992
        %v1066 = vpop.f32.mrf.mxu0
        %v1067 = vadd.f32 0.0, %v1066
        %v1068 = vpop.f32.mrf.mxu0
        %v1069 = vadd.f32 0.0, %v1068
        %1070 = vmatmul.bf16.gmra.mxu0 %v995
        %v1071 = vpop.f32.mrf.mxu0
        %v1072 = vadd.f32 0.0, %v1071
        %v1073 = vpop.f32.mrf.mxu0
        %v1074 = vadd.f32 0.0, %v1073
        %1075 = vmatmul.bf16.gmra.mxu0 %v998
        %v1076 = vpop.f32.mrf.mxu0
        %v1077 = vadd.f32 0.0, %v1076
        %v1078 = vpop.f32.mrf.mxu0
        %v1079 = vadd.f32 0.0, %v1078
        %1080 = vmatmul.bf16.gmra.mxu0 %v1001
        %v1081 = vpop.f32.mrf.mxu0
        %v1082 = vadd.f32 0.0, %v1081
        %v1083 = vpop.f32.mrf.mxu0
        %v1084 = vadd.f32 0.0, %v1083
        %1085 = vmatmul.bf16.gmra.mxu0 %v1004
        %v1086 = vpop.f32.mrf.mxu0
        %v1087 = vadd.f32 0.0, %v1086
        %v1088 = vpop.f32.mrf.mxu0
        %v1089 = vadd.f32 0.0, %v1088
        %1090 = vmatmul.bf16.gmra.mxu0 %v1007
        %v1091 = vpop.f32.mrf.mxu0
        %v1092 = vadd.f32 0.0, %v1091
        %v1093 = vpop.f32.mrf.mxu0
        %v1094 = vadd.f32 0.0, %v1093
        %1095 = vmatmul.bf16.gmra.mxu0 %v1010
        %v1096 = vpop.f32.mrf.mxu0
        %v1097 = vadd.f32 0.0, %v1096
        %v1098 = vpop.f32.mrf.mxu0
        %v1099 = vadd.f32 0.0, %v1098
        %1100 = vmatmul.bf16.gmra.mxu0 %v1013
        %v1101 = vpop.f32.mrf.mxu0
        %v1102 = vadd.f32 0.0, %v1101
        %v1103 = vpop.f32.mrf.mxu0
        %v1104 = vadd.f32 0.0, %v1103
        %1105 = vmatmul.bf16.gmra.mxu0 %v1016
        %v1106 = vpop.f32.mrf.mxu0
        %v1107 = vadd.f32 0.0, %v1106
        %v1108 = vpop.f32.mrf.mxu0
        %v1109 = vadd.f32 0.0, %v1108
        %1110 = vmatmul.bf16.gmra.mxu0 %v1019
        %v1111 = vpop.f32.mrf.mxu0
        %v1112 = vadd.f32 0.0, %v1111
        %v1113 = vpop.f32.mrf.mxu0
        %v1114 = vadd.f32 0.0, %v1113
        %1115 = vdwg.mxu0
        %1116 = vmatpush.bf16.msra.mxu0 0
        %1117 = vmatpush.bf16.msra.mxu0 0
        %1118 = vmatpush.bf16.msra.mxu0 0
        %1119 = vmatpush.bf16.msra.mxu0 0
        %1120 = vmatpush.bf16.msra.mxu0 0
        %1121 = vmatpush.bf16.msra.mxu0 0
        %1122 = vmatpush.bf16.msra.mxu0 0
        %1123 = vmatpush.bf16.msra.mxu0 %v1025
        %1124 = vmatmul.bf16.gmra.mxu0 %v974
        %v1125 = vpop.f32.mrf.mxu0
        %v1126 = vadd.f32 0.0, %v1125
        %v1127 = vpop.f32.mrf.mxu0
        %v1128 = vadd.f32 0.0, %v1127
        %1129 = vmatmul.bf16.gmra.mxu0 %v977
        %v1130 = vpop.f32.mrf.mxu0
        %v1131 = vadd.f32 0.0, %v1130
        %v1132 = vpop.f32.mrf.mxu0
        %v1133 = vadd.f32 0.0, %v1132
        %1134 = vmatmul.bf16.gmra.mxu0 %v980
        %v1135 = vpop.f32.mrf.mxu0
        %v1136 = vadd.f32 0.0, %v1135
        %v1137 = vpop.f32.mrf.mxu0
        %v1138 = vadd.f32 0.0, %v1137
        %1139 = vmatmul.bf16.gmra.mxu0 %v983
        %v1140 = vpop.f32.mrf.mxu0
        %v1141 = vadd.f32 0.0, %v1140
        %v1142 = vpop.f32.mrf.mxu0
        %v1143 = vadd.f32 0.0, %v1142
        %1144 = vmatmul.bf16.gmra.mxu0 %v986
        %v1145 = vpop.f32.mrf.mxu0
        %v1146 = vadd.f32 0.0, %v1145
        %v1147 = vpop.f32.mrf.mxu0
        %v1148 = vadd.f32 0.0, %v1147
        %1149 = vmatmul.bf16.gmra.mxu0 %v989
        %v1150 = vpop.f32.mrf.mxu0
        %v1151 = vadd.f32 0.0, %v1150
        %v1152 = vpop.f32.mrf.mxu0
        %v1153 = vadd.f32 0.0, %v1152
        %1154 = vmatmul.bf16.gmra.mxu0 %v992
        %v1155 = vpop.f32.mrf.mxu0
        %v1156 = vadd.f32 0.0, %v1155
        %v1157 = vpop.f32.mrf.mxu0
        %v1158 = vadd.f32 0.0, %v1157
        %1159 = vmatmul.bf16.gmra.mxu0 %v995
        %v1160 = vpop.f32.mrf.mxu0
        %v1161 = vadd.f32 0.0, %v1160
        %v1162 = vpop.f32.mrf.mxu0
        %v1163 = vadd.f32 0.0, %v1162
        %1164 = vmatmul.bf16.gmra.mxu0 %v998
        %v1165 = vpop.f32.mrf.mxu0
        %v1166 = vadd.f32 0.0, %v1165
        %v1167 = vpop.f32.mrf.mxu0
        %v1168 = vadd.f32 0.0, %v1167
        %1169 = vmatmul.bf16.gmra.mxu0 %v1001
        %v1170 = vpop.f32.mrf.mxu0
        %v1171 = vadd.f32 0.0, %v1170
        %v1172 = vpop.f32.mrf.mxu0
        %v1173 = vadd.f32 0.0, %v1172
        %1174 = vmatmul.bf16.gmra.mxu0 %v1004
        %v1175 = vpop.f32.mrf.mxu0
        %v1176 = vadd.f32 0.0, %v1175
        %v1177 = vpop.f32.mrf.mxu0
        %v1178 = vadd.f32 0.0, %v1177
        %1179 = vmatmul.bf16.gmra.mxu0 %v1007
        %v1180 = vpop.f32.mrf.mxu0
        %v1181 = vadd.f32 0.0, %v1180
        %v1182 = vpop.f32.mrf.mxu0
        %v1183 = vadd.f32 0.0, %v1182
        %1184 = vmatmul.bf16.gmra.mxu0 %v1010
        %v1185 = vpop.f32.mrf.mxu0
        %v1186 = vadd.f32 0.0, %v1185
        %v1187 = vpop.f32.mrf.mxu0
        %v1188 = vadd.f32 0.0, %v1187
        %1189 = vmatmul.bf16.gmra.mxu0 %v1013
        %v1190 = vpop.f32.mrf.mxu0
        %v1191 = vadd.f32 0.0, %v1190
        %v1192 = vpop.f32.mrf.mxu0
        %v1193 = vadd.f32 0.0, %v1192
        %1194 = vmatmul.bf16.gmra.mxu0 %v1016
        %v1195 = vpop.f32.mrf.mxu0
        %v1196 = vadd.f32 0.0, %v1195
        %v1197 = vpop.f32.mrf.mxu0
        %v1198 = vadd.f32 0.0, %v1197
        %1199 = vmatmul.bf16.gmra.mxu0 %v1019
        %v1200 = vpop.f32.mrf.mxu0
        %v1201 = vadd.f32 0.0, %v1200
        %v1202 = vpop.f32.mrf.mxu0
        %v1203 = vadd.f32 0.0, %v1202
        %1204 = vdwg.mxu0
        %v1205 = vmax.f32 %v1037, %v1126
        %1206 = vmax.xlane.f32.xlu0 %v1205
        %v1207 = vpop.xlane.xlu0 %1206
        %v1208 = vmax.f32 %v1039, %v1128
        %1209 = vmax.xlane.f32.xlu0 %v1208
        %v1210 = vpop.xlane.xlu0 %1209
        %v1211 = vmax.f32 %v1042, %v1131
        %1212 = vmax.xlane.f32.xlu0 %v1211
        %v1213 = vpop.xlane.xlu0 %1212
        %v1214 = vmax.f32 %v1044, %v1133
        %1215 = vmax.xlane.f32.xlu0 %v1214
        %v1216 = vpop.xlane.xlu0 %1215
        %v1217 = vmax.f32 %v1047, %v1136
        %1218 = vmax.xlane.f32.xlu0 %v1217
        %v1219 = vpop.xlane.xlu0 %1218
        %v1220 = vmax.f32 %v1049, %v1138
        %1221 = vmax.xlane.f32.xlu0 %v1220
        %v1222 = vpop.xlane.xlu0 %1221
        %v1223 = vmax.f32 %v1052, %v1141
        %1224 = vmax.xlane.f32.xlu0 %v1223
        %v1225 = vpop.xlane.xlu0 %1224
        %v1226 = vmax.f32 %v1054, %v1143
        %1227 = vmax.xlane.f32.xlu0 %v1226
        %v1228 = vpop.xlane.xlu0 %1227
        %v1229 = vmax.f32 %v1057, %v1146
        %1230 = vmax.xlane.f32.xlu0 %v1229
        %v1231 = vpop.xlane.xlu0 %1230
        %v1232 = vmax.f32 %v1059, %v1148
        %1233 = vmax.xlane.f32.xlu0 %v1232
        %v1234 = vpop.xlane.xlu0 %1233
        %v1235 = vmax.f32 %v1062, %v1151
        %1236 = vmax.xlane.f32.xlu0 %v1235
        %v1237 = vpop.xlane.xlu0 %1236
        %v1238 = vmax.f32 %v1064, %v1153
        %1239 = vmax.xlane.f32.xlu0 %v1238
        %v1240 = vpop.xlane.xlu0 %1239
        %v1241 = vmax.f32 %v1067, %v1156
        %1242 = vmax.xlane.f32.xlu0 %v1241
        %v1243 = vpop.xlane.xlu0 %1242
        %v1244 = vmax.f32 %v1069, %v1158
        %1245 = vmax.xlane.f32.xlu0 %v1244
        %v1246 = vpop.xlane.xlu0 %1245
        %v1247 = vmax.f32 %v1072, %v1161
        %1248 = vmax.xlane.f32.xlu0 %v1247
        %v1249 = vpop.xlane.xlu0 %1248
        %v1250 = vmax.f32 %v1074, %v1163
        %1251 = vmax.xlane.f32.xlu0 %v1250
        %v1252 = vpop.xlane.xlu0 %1251
        %v1253 = vmax.f32 %v1077, %v1166
        %1254 = vmax.xlane.f32.xlu0 %v1253
        %v1255 = vpop.xlane.xlu0 %1254
        %v1256 = vmax.f32 %v1079, %v1168
        %1257 = vmax.xlane.f32.xlu0 %v1256
        %v1258 = vpop.xlane.xlu0 %1257
        %v1259 = vmax.f32 %v1082, %v1171
        %1260 = vmax.xlane.f32.xlu0 %v1259
        %v1261 = vpop.xlane.xlu0 %1260
        %v1262 = vmax.f32 %v1084, %v1173
        %1263 = vmax.xlane.f32.xlu0 %v1262
        %v1264 = vpop.xlane.xlu0 %1263
        %v1265 = vmax.f32 %v1087, %v1176
        %1266 = vmax.xlane.f32.xlu0 %v1265
        %v1267 = vpop.xlane.xlu0 %1266
        %v1268 = vmax.f32 %v1089, %v1178
        %1269 = vmax.xlane.f32.xlu0 %v1268
        %v1270 = vpop.xlane.xlu0 %1269
        %v1271 = vmax.f32 %v1092, %v1181
        %1272 = vmax.xlane.f32.xlu0 %v1271
        %v1273 = vpop.xlane.xlu0 %1272
        %v1274 = vmax.f32 %v1094, %v1183
        %1275 = vmax.xlane.f32.xlu0 %v1274
        %v1276 = vpop.xlane.xlu0 %1275
        %v1277 = vmax.f32 %v1097, %v1186
        %1278 = vmax.xlane.f32.xlu0 %v1277
        %v1279 = vpop.xlane.xlu0 %1278
        %v1280 = vmax.f32 %v1099, %v1188
        %1281 = vmax.xlane.f32.xlu0 %v1280
        %v1282 = vpop.xlane.xlu0 %1281
        %v1283 = vmax.f32 %v1102, %v1191
        %1284 = vmax.xlane.f32.xlu0 %v1283
        %v1285 = vpop.xlane.xlu0 %1284
        %v1286 = vmax.f32 %v1104, %v1193
        %1287 = vmax.xlane.f32.xlu0 %v1286
        %v1288 = vpop.xlane.xlu0 %1287
        %v1289 = vmax.f32 %v1107, %v1196
        %1290 = vmax.xlane.f32.xlu0 %v1289
        %v1291 = vpop.xlane.xlu0 %1290
        %v1292 = vmax.f32 %v1109, %v1198
        %1293 = vmax.xlane.f32.xlu0 %v1292
        %v1294 = vpop.xlane.xlu0 %1293
        %v1295 = vmax.f32 %v1112, %v1201
        %1296 = vmax.xlane.f32.xlu0 %v1295
        %v1297 = vpop.xlane.xlu0 %1296
        %v1298 = vmax.f32 %v1114, %v1203
        %1299 = vmax.xlane.f32.xlu0 %v1298
        %v1300 = vpop.xlane.xlu0 %1299
        %v1301 = vsub.f32 %v1037, %v1207
        %v1302 = vsub.f32 %v1126, %v1207
        %v1303 = vsub.f32 %v1039, %v1210
        %v1304 = vsub.f32 %v1128, %v1210
        %v1305 = vsub.f32 %v1042, %v1213
        %v1306 = vsub.f32 %v1131, %v1213
        %v1307 = vsub.f32 %v1044, %v1216
        %v1308 = vsub.f32 %v1133, %v1216
        %v1309 = vsub.f32 %v1047, %v1219
        %v1310 = vsub.f32 %v1136, %v1219
        %v1311 = vsub.f32 %v1049, %v1222
        %v1312 = vsub.f32 %v1138, %v1222
        %v1313 = vsub.f32 %v1052, %v1225
        %v1314 = vsub.f32 %v1141, %v1225
        %v1315 = vsub.f32 %v1054, %v1228
        %v1316 = vsub.f32 %v1143, %v1228
        %v1317 = vsub.f32 %v1057, %v1231
        %v1318 = vsub.f32 %v1146, %v1231
        %v1319 = vsub.f32 %v1059, %v1234
        %v1320 = vsub.f32 %v1148, %v1234
        %v1321 = vsub.f32 %v1062, %v1237
        %v1322 = vsub.f32 %v1151, %v1237
        %v1323 = vsub.f32 %v1064, %v1240
        %v1324 = vsub.f32 %v1153, %v1240
        %v1325 = vsub.f32 %v1067, %v1243
        %v1326 = vsub.f32 %v1156, %v1243
        %v1327 = vsub.f32 %v1069, %v1246
        %v1328 = vsub.f32 %v1158, %v1246
        %v1329 = vsub.f32 %v1072, %v1249
        %v1330 = vsub.f32 %v1161, %v1249
        %v1331 = vsub.f32 %v1074, %v1252
        %v1332 = vsub.f32 %v1163, %v1252
        %v1333 = vsub.f32 %v1077, %v1255
        %v1334 = vsub.f32 %v1166, %v1255
        %v1335 = vsub.f32 %v1079, %v1258
        %v1336 = vsub.f32 %v1168, %v1258
        %v1337 = vsub.f32 %v1082, %v1261
        %v1338 = vsub.f32 %v1171, %v1261
        %v1339 = vsub.f32 %v1084, %v1264
        %v1340 = vsub.f32 %v1173, %v1264
        %v1341 = vsub.f32 %v1087, %v1267
        %v1342 = vsub.f32 %v1176, %v1267
        %v1343 = vsub.f32 %v1089, %v1270
        %v1344 = vsub.f32 %v1178, %v1270
        %v1345 = vsub.f32 %v1092, %v1273
        %v1346 = vsub.f32 %v1181, %v1273
        %v1347 = vsub.f32 %v1094, %v1276
        %v1348 = vsub.f32 %v1183, %v1276
        %v1349 = vsub.f32 %v1097, %v1279
        %v1350 = vsub.f32 %v1186, %v1279
        %v1351 = vsub.f32 %v1099, %v1282
        %v1352 = vsub.f32 %v1188, %v1282
        %v1353 = vsub.f32 %v1102, %v1285
        %v1354 = vsub.f32 %v1191, %v1285
        %v1355 = vsub.f32 %v1104, %v1288
        %v1356 = vsub.f32 %v1193, %v1288
        %v1357 = vsub.f32 %v1107, %v1291
        %v1358 = vsub.f32 %v1196, %v1291
        %v1359 = vsub.f32 %v1109, %v1294
        %v1360 = vsub.f32 %v1198, %v1294
        %v1361 = vsub.f32 %v1112, %v1297
        %v1362 = vsub.f32 %v1201, %v1297
        %v1363 = vsub.f32 %v1114, %v1300
        %v1364 = vsub.f32 %v1203, %v1300
        %v1365 = vmul.f32 %v1301, 1.442695
        %v1366 = vpow.pop %v1365
        %v1367 = vmul.f32 %v1302, 1.442695
        %v1368 = vpow.pop %v1367
        %v1369 = vmul.f32 %v1303, 1.442695
        %v1370 = vpow.pop %v1369
        %v1371 = vmul.f32 %v1304, 1.442695
        %v1372 = vpow.pop %v1371
        %v1373 = vmul.f32 %v1305, 1.442695
        %v1374 = vpow.pop %v1373
        %v1375 = vmul.f32 %v1306, 1.442695
        %v1376 = vpow.pop %v1375
        %v1377 = vmul.f32 %v1307, 1.442695
        %v1378 = vpow.pop %v1377
        %v1379 = vmul.f32 %v1308, 1.442695
        %v1380 = vpow.pop %v1379
        %v1381 = vmul.f32 %v1309, 1.442695
        %v1382 = vpow.pop %v1381
        %v1383 = vmul.f32 %v1310, 1.442695
        %v1384 = vpow.pop %v1383
        %v1385 = vmul.f32 %v1311, 1.442695
        %v1386 = vpow.pop %v1385
        %v1387 = vmul.f32 %v1312, 1.442695
        %v1388 = vpow.pop %v1387
        %v1389 = vmul.f32 %v1313, 1.442695
        %v1390 = vpow.pop %v1389
        %v1391 = vmul.f32 %v1314, 1.442695
        %v1392 = vpow.pop %v1391
        %v1393 = vmul.f32 %v1315, 1.442695
        %v1394 = vpow.pop %v1393
        %v1395 = vmul.f32 %v1316, 1.442695
        %v1396 = vpow.pop %v1395
        %v1397 = vmul.f32 %v1317, 1.442695
        %v1398 = vpow.pop %v1397
        %v1399 = vmul.f32 %v1318, 1.442695
        %v1400 = vpow.pop %v1399
        %v1401 = vmul.f32 %v1319, 1.442695
        %v1402 = vpow.pop %v1401
        %v1403 = vmul.f32 %v1320, 1.442695
        %v1404 = vpow.pop %v1403
        %v1405 = vmul.f32 %v1321, 1.442695
        %v1406 = vpow.pop %v1405
        %v1407 = vmul.f32 %v1322, 1.442695
        %v1408 = vpow.pop %v1407
        %v1409 = vmul.f32 %v1323, 1.442695
        %v1410 = vpow.pop %v1409
        %v1411 = vmul.f32 %v1324, 1.442695
        %v1412 = vpow.pop %v1411
        %v1413 = vmul.f32 %v1325, 1.442695
        %v1414 = vpow.pop %v1413
        %v1415 = vmul.f32 %v1326, 1.442695
        %v1416 = vpow.pop %v1415
        %v1417 = vmul.f32 %v1327, 1.442695
        %v1418 = vpow.pop %v1417
        %v1419 = vmul.f32 %v1328, 1.442695
        %v1420 = vpow.pop %v1419
        %v1421 = vmul.f32 %v1329, 1.442695
        %v1422 = vpow.pop %v1421
        %v1423 = vmul.f32 %v1330, 1.442695
        %v1424 = vpow.pop %v1423
        %v1425 = vmul.f32 %v1331, 1.442695
        %v1426 = vpow.pop %v1425
        %v1427 = vmul.f32 %v1332, 1.442695
        %v1428 = vpow.pop %v1427
        %v1429 = vmul.f32 %v1333, 1.442695
        %v1430 = vpow.pop %v1429
        %v1431 = vmul.f32 %v1334, 1.442695
        %v1432 = vpow.pop %v1431
        %v1433 = vmul.f32 %v1335, 1.442695
        %v1434 = vpow.pop %v1433
        %v1435 = vmul.f32 %v1336, 1.442695
        %v1436 = vpow.pop %v1435
        %v1437 = vmul.f32 %v1337, 1.442695
        %v1438 = vpow.pop %v1437
        %v1439 = vmul.f32 %v1338, 1.442695
        %v1440 = vpow.pop %v1439
        %v1441 = vmul.f32 %v1339, 1.442695
        %v1442 = vpow.pop %v1441
        %v1443 = vmul.f32 %v1340, 1.442695
        %v1444 = vpow.pop %v1443
        %v1445 = vmul.f32 %v1341, 1.442695
        %v1446 = vpow.pop %v1445
        %v1447 = vmul.f32 %v1342, 1.442695
        %v1448 = vpow.pop %v1447
        %v1449 = vmul.f32 %v1343, 1.442695
        %v1450 = vpow.pop %v1449
        %v1451 = vmul.f32 %v1344, 1.442695
        %v1452 = vpow.pop %v1451
        %v1453 = vmul.f32 %v1345, 1.442695
        %v1454 = vpow.pop %v1453
        %v1455 = vmul.f32 %v1346, 1.442695
        %v1456 = vpow.pop %v1455
        %v1457 = vmul.f32 %v1347, 1.442695
        %v1458 = vpow.pop %v1457
        %v1459 = vmul.f32 %v1348, 1.442695
        %v1460 = vpow.pop %v1459
        %v1461 = vmul.f32 %v1349, 1.442695
        %v1462 = vpow.pop %v1461
        %v1463 = vmul.f32 %v1350, 1.442695
        %v1464 = vpow.pop %v1463
        %v1465 = vmul.f32 %v1351, 1.442695
        %v1466 = vpow.pop %v1465
        %v1467 = vmul.f32 %v1352, 1.442695
        %v1468 = vpow.pop %v1467
        %v1469 = vmul.f32 %v1353, 1.442695
        %v1470 = vpow.pop %v1469
        %v1471 = vmul.f32 %v1354, 1.442695
        %v1472 = vpow.pop %v1471
        %v1473 = vmul.f32 %v1355, 1.442695
        %v1474 = vpow.pop %v1473
        %v1475 = vmul.f32 %v1356, 1.442695
        %v1476 = vpow.pop %v1475
        %v1477 = vmul.f32 %v1357, 1.442695
        %v1478 = vpow.pop %v1477
        %v1479 = vmul.f32 %v1358, 1.442695
        %v1480 = vpow.pop %v1479
        %v1481 = vmul.f32 %v1359, 1.442695
        %v1482 = vpow.pop %v1481
        %v1483 = vmul.f32 %v1360, 1.442695
        %v1484 = vpow.pop %v1483
        %v1485 = vmul.f32 %v1361, 1.442695
        %v1486 = vpow.pop %v1485
        %v1487 = vmul.f32 %v1362, 1.442695
        %v1488 = vpow.pop %v1487
        %v1489 = vmul.f32 %v1363, 1.442695
        %v1490 = vpow.pop %v1489
        %v1491 = vmul.f32 %v1364, 1.442695
        %v1492 = vpow.pop %v1491
        %v1493 = vpack.c.bf16 %v1370, %v1366
        %v1494 = vpack.c.bf16 %v1372, %v1368
        %v1495 = vpack.c.bf16 %v1378, %v1374
        %v1496 = vpack.c.bf16 %v1380, %v1376
        %v1497 = vpack.c.bf16 %v1386, %v1382
        %v1498 = vpack.c.bf16 %v1388, %v1384
        %v1499 = vpack.c.bf16 %v1394, %v1390
        %v1500 = vpack.c.bf16 %v1396, %v1392
        %v1501 = vpack.c.bf16 %v1402, %v1398
        %v1502 = vpack.c.bf16 %v1404, %v1400
        %v1503 = vpack.c.bf16 %v1410, %v1406
        %v1504 = vpack.c.bf16 %v1412, %v1408
        %v1505 = vpack.c.bf16 %v1418, %v1414
        %v1506 = vpack.c.bf16 %v1420, %v1416
        %v1507 = vpack.c.bf16 %v1426, %v1422
        %v1508 = vpack.c.bf16 %v1428, %v1424
        %v1509 = vpack.c.bf16 %v1434, %v1430
        %v1510 = vpack.c.bf16 %v1436, %v1432
        %v1511 = vpack.c.bf16 %v1442, %v1438
        %v1512 = vpack.c.bf16 %v1444, %v1440
        %v1513 = vpack.c.bf16 %v1450, %v1446
        %v1514 = vpack.c.bf16 %v1452, %v1448
        %v1515 = vpack.c.bf16 %v1458, %v1454
        %v1516 = vpack.c.bf16 %v1460, %v1456
        %v1517 = vpack.c.bf16 %v1466, %v1462
        %v1518 = vpack.c.bf16 %v1468, %v1464
        %v1519 = vpack.c.bf16 %v1474, %v1470
        %v1520 = vpack.c.bf16 %v1476, %v1472
        %v1521 = vpack.c.bf16 %v1482, %v1478
        %v1522 = vpack.c.bf16 %v1484, %v1480
        %v1523 = vpack.c.bf16 %v1490, %v1486
        %v1524 = vpack.c.bf16 %v1492, %v1488
        %1525 = vmatpush.bf16.xpose.msra.mxu0 %v1507
        %1526 = vmatpush.bf16.xpose.msra.mxu0 %v1505
        %1527 = vmatpush.bf16.xpose.msra.mxu0 %v1503
        %1528 = vmatpush.bf16.xpose.msra.mxu0 %v1501
        %1529 = vmatpush.bf16.xpose.msra.mxu0 %v1499
        %1530 = vmatpush.bf16.xpose.msra.mxu0 %v1497
        %1531 = vmatpush.bf16.xpose.msra.mxu0 %v1495
        %1532 = vmatpush.bf16.xpose.msra.mxu0 %v1493
        %1533 = vmatmul.bf16.gmra.mxu0 %v947
        %v1534 = vpop.f32.mrf.mxu0
        %v1535 = vadd.f32 0.0, %v1534
        %v1536 = vpop.f32.mrf.mxu0
        %1537 = vdwg.mxu0
        %1538 = vmatpush.bf16.xpose.msra.mxu0 %v1508
        %1539 = vmatpush.bf16.xpose.msra.mxu0 %v1506
        %1540 = vmatpush.bf16.xpose.msra.mxu0 %v1504
        %1541 = vmatpush.bf16.xpose.msra.mxu0 %v1502
        %1542 = vmatpush.bf16.xpose.msra.mxu0 %v1500
        %1543 = vmatpush.bf16.xpose.msra.mxu0 %v1498
        %1544 = vmatpush.bf16.xpose.msra.mxu0 %v1496
        %1545 = vmatpush.bf16.xpose.msra.mxu0 %v1494
        %1546 = vmatmul.bf16.gmra.mxu0 %v948
        %v1547 = vpop.f32.mrf.mxu0
        %v1548 = vadd.f32 %v1535, %v1547
        %v1549 = vpop.f32.mrf.mxu0
        %1550 = vdwg.mxu0
        %1551 = vmatpush.bf16.xpose.msra.mxu0 %v1523
        %1552 = vmatpush.bf16.xpose.msra.mxu0 %v1521
        %1553 = vmatpush.bf16.xpose.msra.mxu0 %v1519
        %1554 = vmatpush.bf16.xpose.msra.mxu0 %v1517
        %1555 = vmatpush.bf16.xpose.msra.mxu0 %v1515
        %1556 = vmatpush.bf16.xpose.msra.mxu0 %v1513
        %1557 = vmatpush.bf16.xpose.msra.mxu0 %v1511
        %1558 = vmatpush.bf16.xpose.msra.mxu0 %v1509
        %1559 = vmatmul.bf16.gmra.mxu0 %v947
        %v1560 = vpop.f32.mrf.mxu0
        %v1561 = vadd.f32 0.0, %v1560
        %v1562 = vpop.f32.mrf.mxu0
        %1563 = vdwg.mxu0
        %1564 = vmatpush.bf16.xpose.msra.mxu0 %v1524
        %1565 = vmatpush.bf16.xpose.msra.mxu0 %v1522
        %1566 = vmatpush.bf16.xpose.msra.mxu0 %v1520
        %1567 = vmatpush.bf16.xpose.msra.mxu0 %v1518
        %1568 = vmatpush.bf16.xpose.msra.mxu0 %v1516
        %1569 = vmatpush.bf16.xpose.msra.mxu0 %v1514
        %1570 = vmatpush.bf16.xpose.msra.mxu0 %v1512
        %1571 = vmatpush.bf16.xpose.msra.mxu0 %v1510
        %1572 = vmatmul.bf16.gmra.mxu0 %v948
        %v1573 = vpop.f32.mrf.mxu0
        %v1574 = vadd.f32 %v1561, %v1573
        %v1575 = vpop.f32.mrf.mxu0
        %1576 = vdwg.mxu0
        %1577 = vmatpush.bf16.xpose.msra.mxu0 %v1507
        %1578 = vmatpush.bf16.xpose.msra.mxu0 %v1505
        %1579 = vmatpush.bf16.xpose.msra.mxu0 %v1503
        %1580 = vmatpush.bf16.xpose.msra.mxu0 %v1501
        %1581 = vmatpush.bf16.xpose.msra.mxu0 %v1499
        %1582 = vmatpush.bf16.xpose.msra.mxu0 %v1497
        %1583 = vmatpush.bf16.xpose.msra.mxu0 %v1495
        %1584 = vmatpush.bf16.xpose.msra.mxu0 %v1493
        %1585 = vmatmul.bf16.gmra.mxu0 1065369472
        %v1586 = vpop.f32.mrf.mxu0
        %v1587 = vadd.f32 0.0, %v1586
        %v1588 = vpop.f32.mrf.mxu0
        %1589 = vdwg.mxu0
        %1590 = vmatpush.bf16.xpose.msra.mxu0 %v1508
        %1591 = vmatpush.bf16.xpose.msra.mxu0 %v1506
        %1592 = vmatpush.bf16.xpose.msra.mxu0 %v1504
        %1593 = vmatpush.bf16.xpose.msra.mxu0 %v1502
        %1594 = vmatpush.bf16.xpose.msra.mxu0 %v1500
        %1595 = vmatpush.bf16.xpose.msra.mxu0 %v1498
        %1596 = vmatpush.bf16.xpose.msra.mxu0 %v1496
        %1597 = vmatpush.bf16.xpose.msra.mxu0 %v1494
        %1598 = vmatmul.bf16.gmra.mxu0 1065369472
        %v1599 = vpop.f32.mrf.mxu0
        %v1600 = vadd.f32 %v1587, %v1599
        %v1601 = vpop.f32.mrf.mxu0
        %1602 = vdwg.mxu0
        %1603 = vmatpush.bf16.xpose.msra.mxu0 %v1523
        %1604 = vmatpush.bf16.xpose.msra.mxu0 %v1521
        %1605 = vmatpush.bf16.xpose.msra.mxu0 %v1519
        %1606 = vmatpush.bf16.xpose.msra.mxu0 %v1517
        %1607 = vmatpush.bf16.xpose.msra.mxu0 %v1515
        %1608 = vmatpush.bf16.xpose.msra.mxu0 %v1513
        %1609 = vmatpush.bf16.xpose.msra.mxu0 %v1511
        %1610 = vmatpush.bf16.xpose.msra.mxu0 %v1509
        %1611 = vmatmul.bf16.gmra.mxu0 1065369472
        %v1612 = vpop.f32.mrf.mxu0
        %v1613 = vadd.f32 0.0, %v1612
        %v1614 = vpop.f32.mrf.mxu0
        %1615 = vdwg.mxu0
        %1616 = vmatpush.bf16.xpose.msra.mxu0 %v1524
        %1617 = vmatpush.bf16.xpose.msra.mxu0 %v1522
        %1618 = vmatpush.bf16.xpose.msra.mxu0 %v1520
        %1619 = vmatpush.bf16.xpose.msra.mxu0 %v1518
        %1620 = vmatpush.bf16.xpose.msra.mxu0 %v1516
        %1621 = vmatpush.bf16.xpose.msra.mxu0 %v1514
        %1622 = vmatpush.bf16.xpose.msra.mxu0 %v1512
        %1623 = vmatpush.bf16.xpose.msra.mxu0 %v1510
        %1624 = vmatmul.bf16.gmra.mxu0 1065369472
        %v1625 = vpop.f32.mrf.mxu0
        %v1626 = vadd.f32 %v1613, %v1625
        %v1627 = vpop.f32.mrf.mxu0
        %1628 = vdwg.mxu0
        %v1629 = vrcp.pop %v1600
        %v1630 = vrcp.pop %v1626
        %v1631 = vperm.slane %v1629, 0
        %v1632 = vperm.slane %v1630, 0
        %v1633 = vmul.f32 %v1548, %v1631
        %v1634 = vmul.f32 %v1574, %v1632
        %v1635 = vpack.c.bf16 %v1633, %v1633
        %v1636 = vpack.c.bf16 %v1634, %v1634
        %v1637 = vld [vmem:[%s10] sm:$0x3]
        %v1638 = vld [vmem:[%s11] sm:$0xf]
        %1640 = vset.pattern.permute.xlu0 0
        %1641 = vperm.xlu0 %1640, %v1638
        %v1642 = vpop.permute.xlu0 %1641
        %v1645 = vsel %vm462, %v1637, 0
        %v1648 = vsel %vm838, %v1635, 0
        %v1651 = vsel %vm838, %v1636, 0
        %1653 = vmatpush.bf16.msra.mxu0 0
        %1654 = vmatpush.bf16.msra.mxu0 0
        %1655 = vmatpush.bf16.msra.mxu0 0
        %1656 = vmatpush.bf16.msra.mxu0 0
        %1657 = vmatpush.bf16.msra.mxu0 0
        %1658 = vmatpush.bf16.msra.mxu0 0
        %1659 = vmatpush.bf16.msra.mxu0 0
        %1660 = vmatpush.bf16.msra.mxu0 %v1648
        %1661 = vmatmul.bf16.gmra.mxu0 %v1645
        %v1662 = vpop.f32.mrf.mxu0
        %v1663 = vadd.f32 %v1642, %v1662
        %v1664 = vpop.f32.mrf.mxu0
        %1665 = vdwg.mxu0
        %1666 = vmatpush.bf16.msra.mxu0 0
        %1667 = vmatpush.bf16.msra.mxu0 0
        %1668 = vmatpush.bf16.msra.mxu0 0
        %1669 = vmatpush.bf16.msra.mxu0 0
        %1670 = vmatpush.bf16.msra.mxu0 0
        %1671 = vmatpush.bf16.msra.mxu0 0
        %1672 = vmatpush.bf16.msra.mxu0 0
        %1673 = vmatpush.bf16.msra.mxu0 %v1651
        %1674 = vmatmul.bf16.gmra.mxu0 %v1645
        %v1675 = vpop.f32.mrf.mxu0
        %v1676 = vadd.f32 %v1642, %v1675
        %v1677 = vpop.f32.mrf.mxu0
        %1678 = vdwg.mxu0
        %v1681 = vrot.slane %v1676, 4
        %v1682 = vsel %vm441, %v1663, %v1681
        %v1684 = vadd.f32 %v434, %v1682
        %1685 = vst [vmem:[%s431] sm:$0xff] %v1684
        %s1686 = sand.u32 %s294, 1
        %s1687 = scalar_lea.sflag [#allocation5], %s1686
        %s1688 = sand.u32 %s294, 1
        %s1689 = smul.addr %s1688, 8
        %s1690 = scalar_lea.vmem [#allocation6], %s1689
        // Predicated region
        $region73: #{tpu_custom_call.1} parent=67 // pred_check
          %p1691 = pneg %p304
        $region74: #{tpu_custom_call.1} parent=67 // pred_check_branch
          %1693 = sbr.rel (%p1691) target = $region76
        $region75: #{tpu_custom_call.1} parent=67 // pred_region
          %1695 = vsyncadd %s1687, 0
          %s1696 = smul.addr %s29, 2
          %s1697 = smul.addr %s1696, 4
          %s1698 = scalar_lea.hbm %s12, %s1697
          %s1700 = sshll.u32 %s1690, 4
          %s1701 = int_to_ptr.vmem [resolvable:$true] %s1700
          %s1702 = sshll.u32 %s1698, 4
          %s1703 = int_to_ptr.hbm [resolvable:$true] %s1702
          %1705 = dma.vmem_to_hbm [thread:$0]  %s1701, 128, %s1703, %s1687
        $region76: #{tpu_custom_call.1} parent=67 // pred_fallthru
          _
      $region68: #{tpu_custom_call.1} parent=5 // pred_fallthru
        _
      %p1706 = scmp.le.s32.totalorder 2, %s24
      // Predicated region
      $region77: #{tpu_custom_call.1} parent=5 // pred_check
        %p1707 = pneg %p1706
      $region78: #{tpu_custom_call.1} parent=5 // pred_check_branch
        %1709 = sbr.rel (%p1707) target = $region80
      $region79: #{tpu_custom_call.1} parent=5 // pred_region
        %s1710 = ssub.s32 %s24, 2
        // Predicated region
        $region81: #{tpu_custom_call.1} parent=79 // pred_check
          %p1711 = pneg %p310
        $region82: #{tpu_custom_call.1} parent=79 // pred_check_branch
          %1713 = sbr.rel (%p1711) target = $region84
        $region83: #{tpu_custom_call.1} parent=79 // pred_region
          %s1714 = sand.u32 %s295, 1
          %s1715 = scalar_lea.sflag [#allocation5], %s1714
          %s1716 = sand.u32 %s295, 1
          %s1717 = smul.addr %s1716, 8
          %s1718 = scalar_lea.vmem [#allocation6], %s1717
          %1720 = dma.done %s1715, 128
        $region84: #{tpu_custom_call.1} parent=79 // pred_fallthru
          _
      $region80: #{tpu_custom_call.1} parent=5 // pred_fallthru
        _
    $region6: #{tpu_custom_call.1} parent=1 // loop_footer
      %s28 = sadd.s32 1, %s24
    $region7: #{tpu_custom_call.1} parent=1 // loop_footer_branch
      %23 = sbr.rel target = $region3
    $region8: #{tpu_custom_call.1} parent=1 // loop_exit
      _
    %1721 = vsyncpa [#allocation4], 1
    %s1722 = scalar_lea.sflag [#allocation4], 1
    %1723 = vsyncpa %s1722, 1
    %1724 = vsyncpa [#allocation5], 1
    %s1725 = scalar_lea.sflag [#allocation5], 1
    %1726 = vsyncpa %s1725, 1

</llo_original>
